<compile_context>
chip_gen: v5e
topology: v5e:2x2
jax: 0.10.0
libtpu: 0.0.40
codegen_flags: <defaults>
</compile_context>

<pallas_src>
import functools

import jax
import jax.numpy as jnp
import numpy as np
from jax.experimental import pallas as pl
from jax.experimental.pallas import tpu as pltpu


# ------------------------------- fused kernel ------------------------------- #

def _fused_mha_kernel(q_ref, k_ref, v_ref,
                      wq_ref, bq_ref, wk_ref, bk_ref, wv_ref, bv_ref,
                      fcw_ref, fcb_ref, gamma_ref, beta_ref,
                      o_ref, a_ref=None, *,
                      n_head, d_k, d_v, inv_temperature, eps, mxu_dtype):
    """One grid step == one batch element.  Everything stays in VMEM/vregs."""
    q = q_ref[0]          # (len_q, d_model)
    k = k_ref[0]          # (len_k, d_model)
    v = v_ref[0]          # (len_k, d_model)

    def mm(a, b):
        # MXU matmul; operands optionally bf16, accumulation always f32.
        return jnp.dot(a.astype(mxu_dtype), b.astype(mxu_dtype),
                       preferred_element_type=jnp.float32)

    # QKV projections (weights pre-transposed to (d_in, d_out), VMEM-resident).
    qp = mm(q, wq_ref[...]) + bq_ref[...]          # (len_q, n_head*d_k)
    kp = mm(k, wk_ref[...]) + bk_ref[...]          # (len_k, n_head*d_k)
    vp = mm(v, wv_ref[...]) + bv_ref[...]          # (len_k, n_head*d_v)

    # Static unroll over heads (n_head is small); per-head slices are lane slices of
    # the packed projections, so no head-split transpose is ever materialized.
    head_outs = []
    for h in range(n_head):
        qh = qp[:, h * d_k:(h + 1) * d_k]
        kh = kp[:, h * d_k:(h + 1) * d_k]
        vh = vp[:, h * d_v:(h + 1) * d_v]
        # scores = q @ k^T / temperature  (contract last dims; no explicit transpose)
        s = jax.lax.dot_general(qh.astype(mxu_dtype), kh.astype(mxu_dtype),
                                (((1,), (1,)), ((), ())),
                                preferred_element_type=jnp.float32) * inv_temperature
        # softmax over keys (dim=2 in the PyTorch module); stats + exact divide in f32
        s = s - jnp.max(s, axis=-1, keepdims=True)
        e = jnp.exp(s)
        p = e / jnp.sum(e, axis=-1, keepdims=True)
        if a_ref is not None:
            a_ref[h, 0, :, :] = p.astype(a_ref.dtype)
        head_outs.append(jnp.dot(p.astype(mxu_dtype), vh.astype(mxu_dtype),
                                 preferred_element_type=jnp.float32))

    # Single lane-dense, head-merged context write instead of n_head narrow stores.
    ctx = jnp.concatenate(head_outs, axis=-1)      # (len_q, n_head*d_v), f32

    # fc + (identity dropout) + residual + LayerNorm, stats in f32.
    y = mm(ctx, fcw_ref[...]) + fcb_ref[...]
    z = y + q.astype(jnp.float32)
    mu = jnp.mean(z, axis=-1, keepdims=True)
    var = jnp.mean((z - mu) * (z - mu), axis=-1, keepdims=True)
    zn = (z - mu) * jax.lax.rsqrt(var + eps)
    o_ref[0, :, :] = (zn * gamma_ref[...] + beta_ref[...]).astype(o_ref.dtype)


def multi_head_attention(params, q, k, v, *, n_head, d_k, d_v,
                         eps=1e-5, return_attn=True, mxu_dtype=jnp.float32):
    """q: (sz_b, len_q, d_model); k, v: (sz_b, len_k, d_model).

    Returns (output, attn) like the PyTorch module:
      output: (sz_b, len_q, d_model)
      attn:   (n_head*sz_b, len_q, len_k)   (None if return_attn=False)
    """
    sz_b, len_q, d_model = q.shape
    _, len_k, _ = k.shape
    inv_temperature = float(1.0 / np.power(d_k, 0.5))

    kernel = functools.partial(
        _fused_mha_kernel, n_head=n_head, d_k=d_k, d_v=d_v,
        inv_temperature=inv_temperature, eps=eps, mxu_dtype=mxu_dtype)

    batch3 = lambda b: (b, 0, 0)
    const2 = lambda b: (0, 0)       # VMEM-resident weights / biases / LN params

    in_specs = [
        pl.BlockSpec((1, len_q, d_model), batch3),
        pl.BlockSpec((1, len_k, d_model), batch3),
        pl.BlockSpec((1, len_k, d_model), batch3),
        pl.BlockSpec((d_model, n_head * d_k), const2),
        pl.BlockSpec((1, n_head * d_k), const2),
        pl.BlockSpec((d_model, n_head * d_k), const2),
        pl.BlockSpec((1, n_head * d_k), const2),
        pl.BlockSpec((d_model, n_head * d_v), const2),
        pl.BlockSpec((1, n_head * d_v), const2),
        pl.BlockSpec((n_head * d_v, d_model), const2),
        pl.BlockSpec((1, d_model), const2),
        pl.BlockSpec((1, d_model), const2),
        pl.BlockSpec((1, d_model), const2),
    ]
    out_specs = [pl.BlockSpec((1, len_q, d_model), batch3)]
    out_shape = [jax.ShapeDtypeStruct((sz_b, len_q, d_model), q.dtype)]
    if return_attn:
        # Written directly in the module's head-major layout (trailing reshape is free).
        out_specs.append(pl.BlockSpec((n_head, 1, len_q, len_k), lambda b: (0, b, 0, 0)))
        out_shape.append(jax.ShapeDtypeStruct((n_head, sz_b, len_q, len_k), q.dtype))

    results = pl.pallas_call(
        kernel,
        grid=(sz_b,),
        in_specs=in_specs,
        out_specs=out_specs,
        out_shape=out_shape,
        compiler_params=pltpu.CompilerParams(dimension_semantics=("parallel",)),
    )(q, k, v,
      params["w_qs_t"], params["b_qs"].reshape(1, -1),
      params["w_ks_t"], params["b_ks"].reshape(1, -1),
      params["w_vs_t"], params["b_vs"].reshape(1, -1),
      params["fc_w_t"], params["fc_b"].reshape(1, -1),
      params["ln_gamma"].reshape(1, -1), params["ln_beta"].reshape(1, -1))

    if return_attn:
        out, attn4 = results
        return out, attn4.reshape(n_head * sz_b, len_q, len_k)
    (out,) = results
    return out, None


# ------------------------------ parameter init ------------------------------ #

def init_mha_params(key, n_head, d_model, d_k, d_v, dtype=jnp.float32):
    """Weights are stored pre-transposed to (d_in, d_out); same init distributions
    as the PyTorch module."""
    ks = jax.random.split(key, 8)
    std_qk = np.sqrt(2.0 / (d_model + d_k))
    std_v = np.sqrt(2.0 / (d_model + d_v))
    std_fc = np.sqrt(2.0 / (n_head * d_v + d_model))   # xavier_normal
    bnd = 1.0 / np.sqrt(d_model)                       # PyTorch Linear bias init
    bnd_fc = 1.0 / np.sqrt(n_head * d_v)

    return {
        "w_qs_t": (std_qk * jax.random.normal(ks[0], (d_model, n_head * d_k))).astype(dtype),
        "b_qs": jax.random.uniform(ks[1], (n_head * d_k,), minval=-bnd, maxval=bnd).astype(dtype),
        "w_ks_t": (std_qk * jax.random.normal(ks[2], (d_model, n_head * d_k))).astype(dtype),
        "b_ks": jax.random.uniform(ks[3], (n_head * d_k,), minval=-bnd, maxval=bnd).astype(dtype),
        "w_vs_t": (std_v * jax.random.normal(ks[4], (d_model, n_head * d_v))).astype(dtype),
        "b_vs": jax.random.uniform(ks[5], (n_head * d_v,), minval=-bnd, maxval=bnd).astype(dtype),
        "fc_w_t": (std_fc * jax.random.normal(ks[6], (n_head * d_v, d_model))).astype(dtype),
        "fc_b": jax.random.uniform(ks[7], (d_model,), minval=-bnd_fc, maxval=bnd_fc).astype(dtype),
        "ln_gamma": jnp.ones((d_model,), dtype),
        "ln_beta": jnp.zeros((d_model,), dtype),
    }


# ------------------------------ pure-JAX reference -------------------------- #

def mha_reference(params, q, k, v, *, n_head, d_k, d_v, eps=1e-5,
                  operand_dtype=jnp.float32):
    """Matches the PyTorch forward.  `operand_dtype` mirrors the kernel's mxu_dtype
    (matmul operands cast, accumulation in f32, stats in f32)."""
    sz_b, len_q, d_model = q.shape
    _, len_k, _ = k.shape
    residual = q
    hp = jax.lax.Precision.HIGHEST
    od = operand_dtype

    def mm(a, b):
        return jnp.dot(a.astype(od), b.astype(od),
                       preferred_element_type=jnp.float32, precision=hp)

    qp = mm(q.reshape(-1, d_model), params["w_qs_t"]) + params["b_qs"]
    kp = mm(k.reshape(-1, d_model), params["w_ks_t"]) + params["b_ks"]
    vp = mm(v.reshape(-1, d_model), params["w_vs_t"]) + params["b_vs"]
    qh = qp.reshape(sz_b, len_q, n_head, d_k).transpose(2, 0, 1, 3).reshape(-1, len_q, d_k)
    kh = kp.reshape(sz_b, len_k, n_head, d_k).transpose(2, 0, 1, 3).reshape(-1, len_k, d_k)
    vh = vp.reshape(sz_b, len_k, n_head, d_v).transpose(2, 0, 1, 3).reshape(-1, len_k, d_v)
    s = jnp.einsum("bqd,bkd->bqk", qh.astype(od), kh.astype(od),
                   preferred_element_type=jnp.float32, precision=hp) * (1.0 / np.power(d_k, 0.5))
    attn = jax.nn.softmax(s, axis=-1)
    o = jnp.einsum("bqk,bkd->bqd", attn.astype(od), vh.astype(od),
                   preferred_element_type=jnp.float32, precision=hp)
    o = o.reshape(n_head, sz_b, len_q, d_v).transpose(1, 2, 0, 3).reshape(sz_b, len_q, -1)
    y = mm(o.reshape(-1, n_head * d_v), params["fc_w_t"]) + params["fc_b"]
    z = y.reshape(sz_b, len_q, d_model) + residual
    mu = z.mean(-1, keepdims=True)
    var = ((z - mu) ** 2).mean(-1, keepdims=True)
    out = (z - mu) / jnp.sqrt(var + eps) * params["ln_gamma"] + params["ln_beta"]
    return out.astype(q.dtype), attn.astype(q.dtype)


# ----------------------------------- main ----------------------------------- #

if __name__ == "__main__":
    n_head, d_model, d_k, d_v = 4, 32, 8, 8
    sz_b, seq_len = 2, 8

    key = jax.random.PRNGKey(0)
    kx, kq, kk, kv, kp = jax.random.split(key, 5)
    params = init_mha_params(kp, n_head, d_model, d_k, d_v)

    x = jax.random.normal(kx, (sz_b, seq_len, d_model), jnp.float32)
    q = jax.random.normal(kq, (sz_b, seq_len, d_model), jnp.float32)
    k = jax.random.normal(kk, (sz_b, seq_len, d_model), jnp.float32)
    v = jax.random.normal(kv, (sz_b, seq_len, d_model), jnp.float32)

    cases = [("self", x, x, x), ("cross", q, k, v)]
    # f32 MXU operands checked tightly; bf16 MXU operands (perf path) checked against a
    # reference that uses the same operand rounding.
    for mxu_dtype, tol in ((jnp.float32, 2e-3), (jnp.bfloat16, 1e-2)):
        for name, qi, ki, vi in cases:
            out, attn = multi_head_attention(params, qi, ki, vi, n_head=n_head,
                                             d_k=d_k, d_v=d_v, mxu_dtype=mxu_dtype)
            jax.block_until_ready((out, attn))
            r_out, r_attn = mha_reference(params, qi, ki, vi, n_head=n_head, d_k=d_k,
                                          d_v=d_v, operand_dtype=mxu_dtype)
            assert out.shape == (sz_b, seq_len, d_model)
            assert attn.shape == (n_head * sz_b, seq_len, seq_len)
            assert bool(jnp.all(jnp.isfinite(out))) and bool(jnp.all(jnp.isfinite(attn)))
            # exact divide -> softmax rows sum to 1
            assert bool(jnp.allclose(jnp.sum(attn, axis=-1), 1.0, atol=1e-3)), name
            assert bool(jnp.allclose(attn, r_attn, rtol=tol, atol=tol)), name
            assert bool(jnp.allclose(out, r_out, rtol=tol, atol=tol)), name

    # Inference path without the O(len^2) attention-map output.
    out_nf, attn_none = multi_head_attention(params, x, x, x, n_head=n_head,
                                             d_k=d_k, d_v=d_v, return_attn=False)
    jax.block_until_ready(out_nf)
    assert attn_none is None
    r_out, _ = mha_reference(params, x, x, x, n_head=n_head, d_k=d_k, d_v=d_v)
    assert bool(jnp.allclose(out_nf, r_out, rtol=2e-3, atol=2e-3))

    print("KERNEL_OK")
</pallas_src>

<mosaic_0001>
module attributes {stable_mosaic.version = 11 : i64} {
  func.func @_fused_mha_kernel(%arg0: i32, %arg1: memref<1x8x32xf32, #tpu.memory_space<vmem>>, %arg2: memref<1x8x32xf32, #tpu.memory_space<vmem>>, %arg3: memref<1x8x32xf32, #tpu.memory_space<vmem>>, %arg4: memref<32x32xf32, #tpu.memory_space<vmem>>, %arg5: memref<1x32xf32, #tpu.memory_space<vmem>>, %arg6: memref<32x32xf32, #tpu.memory_space<vmem>>, %arg7: memref<1x32xf32, #tpu.memory_space<vmem>>, %arg8: memref<32x32xf32, #tpu.memory_space<vmem>>, %arg9: memref<1x32xf32, #tpu.memory_space<vmem>>, %arg10: memref<32x32xf32, #tpu.memory_space<vmem>>, %arg11: memref<1x32xf32, #tpu.memory_space<vmem>>, %arg12: memref<1x32xf32, #tpu.memory_space<vmem>>, %arg13: memref<1x32xf32, #tpu.memory_space<vmem>>, %arg14: memref<1x8x32xf32, #tpu.memory_space<vmem>>, %arg15: memref<4x1x8x8xf32, #tpu.memory_space<vmem>>) attributes {dimension_semantics = [#tpu.dimension_semantics<parallel>], iteration_bounds = array<i64: 2>, scalar_prefetch = 0 : i64, scratch_operands = 0 : i64, tpu.core_type = #tpu.core_type<tc>, window_params = [{transform_indices = @transform_0, window_bounds = array<i64: 1, 8, 32>}, {transform_indices = @transform_1, window_bounds = array<i64: 1, 8, 32>}, {transform_indices = @transform_2, window_bounds = array<i64: 1, 8, 32>}, {pipeline_mode = #tpu.pipeline_mode<synchronous>, transform_indices = @transform_3, window_bounds = array<i64: 32, 32>}, {pipeline_mode = #tpu.pipeline_mode<synchronous>, transform_indices = @transform_4, window_bounds = array<i64: 1, 32>}, {pipeline_mode = #tpu.pipeline_mode<synchronous>, transform_indices = @transform_5, window_bounds = array<i64: 32, 32>}, {pipeline_mode = #tpu.pipeline_mode<synchronous>, transform_indices = @transform_6, window_bounds = array<i64: 1, 32>}, {pipeline_mode = #tpu.pipeline_mode<synchronous>, transform_indices = @transform_7, window_bounds = array<i64: 32, 32>}, {pipeline_mode = #tpu.pipeline_mode<synchronous>, transform_indices = @transform_8, window_bounds = array<i64: 1, 32>}, {pipeline_mode = #tpu.pipeline_mode<synchronous>, transform_indices = @transform_9, window_bounds = array<i64: 32, 32>}, {pipeline_mode = #tpu.pipeline_mode<synchronous>, transform_indices = @transform_10, window_bounds = array<i64: 1, 32>}, {pipeline_mode = #tpu.pipeline_mode<synchronous>, transform_indices = @transform_11, window_bounds = array<i64: 1, 32>}, {pipeline_mode = #tpu.pipeline_mode<synchronous>, transform_indices = @transform_12, window_bounds = array<i64: 1, 32>}, {transform_indices = @transform_13, window_bounds = array<i64: 1, 8, 32>}, {transform_indices = @transform_14, window_bounds = array<i64: 4, 1, 8, 8>}]} {
    %c0 = arith.constant 0 : index
    %c0_0 = arith.constant 0 : index
    %c0_1 = arith.constant 0 : index
    %0 = vector.load %arg1[%c0, %c0_0, %c0_1] : memref<1x8x32xf32, #tpu.memory_space<vmem>>, vector<1x8x32xf32>
    %1 = vector.shape_cast %0 : vector<1x8x32xf32> to vector<8x32xf32>
    %c0_2 = arith.constant 0 : index
    %c0_3 = arith.constant 0 : index
    %c0_4 = arith.constant 0 : index
    %2 = vector.load %arg2[%c0_2, %c0_3, %c0_4] : memref<1x8x32xf32, #tpu.memory_space<vmem>>, vector<1x8x32xf32>
    %3 = vector.shape_cast %2 : vector<1x8x32xf32> to vector<8x32xf32>
    %c0_5 = arith.constant 0 : index
    %c0_6 = arith.constant 0 : index
    %c0_7 = arith.constant 0 : index
    %4 = vector.load %arg3[%c0_5, %c0_6, %c0_7] : memref<1x8x32xf32, #tpu.memory_space<vmem>>, vector<1x8x32xf32>
    %5 = vector.shape_cast %4 : vector<1x8x32xf32> to vector<8x32xf32>
    %c0_8 = arith.constant 0 : index
    %c0_9 = arith.constant 0 : index
    %6 = vector.load %arg4[%c0_8, %c0_9] : memref<32x32xf32, #tpu.memory_space<vmem>>, vector<32x32xf32>
    %cst = arith.constant dense<0.000000e+00> : vector<8x32xf32>
    %7 = tpu.matmul %1, %6, %cst {dimension_numbers = #tpu.dot_dimension_numbers<[1], [0], [0], [1], [0, 0, 1, 1], [], []>} : vector<8x32xf32>, vector<32x32xf32>, vector<8x32xf32> -> vector<8x32xf32>
    %c0_10 = arith.constant 0 : index
    %c0_11 = arith.constant 0 : index
    %8 = vector.load %arg5[%c0_10, %c0_11] : memref<1x32xf32, #tpu.memory_space<vmem>>, vector<1x32xf32>
    %9 = vector.broadcast %8 : vector<1x32xf32> to vector<8x32xf32>
    %10 = arith.addf %7, %9 : vector<8x32xf32>
    %c0_12 = arith.constant 0 : index
    %c0_13 = arith.constant 0 : index
    %11 = vector.load %arg6[%c0_12, %c0_13] : memref<32x32xf32, #tpu.memory_space<vmem>>, vector<32x32xf32>
    %cst_14 = arith.constant dense<0.000000e+00> : vector<8x32xf32>
    %12 = tpu.matmul %3, %11, %cst_14 {dimension_numbers = #tpu.dot_dimension_numbers<[1], [0], [0], [1], [0, 0, 1, 1], [], []>} : vector<8x32xf32>, vector<32x32xf32>, vector<8x32xf32> -> vector<8x32xf32>
    %c0_15 = arith.constant 0 : index
    %c0_16 = arith.constant 0 : index
    %13 = vector.load %arg7[%c0_15, %c0_16] : memref<1x32xf32, #tpu.memory_space<vmem>>, vector<1x32xf32>
    %14 = vector.broadcast %13 : vector<1x32xf32> to vector<8x32xf32>
    %15 = arith.addf %12, %14 : vector<8x32xf32>
    %c0_17 = arith.constant 0 : index
    %c0_18 = arith.constant 0 : index
    %16 = vector.load %arg8[%c0_17, %c0_18] : memref<32x32xf32, #tpu.memory_space<vmem>>, vector<32x32xf32>
    %cst_19 = arith.constant dense<0.000000e+00> : vector<8x32xf32>
    %17 = tpu.matmul %5, %16, %cst_19 {dimension_numbers = #tpu.dot_dimension_numbers<[1], [0], [0], [1], [0, 0, 1, 1], [], []>} : vector<8x32xf32>, vector<32x32xf32>, vector<8x32xf32> -> vector<8x32xf32>
    %c0_20 = arith.constant 0 : index
    %c0_21 = arith.constant 0 : index
    %18 = vector.load %arg9[%c0_20, %c0_21] : memref<1x32xf32, #tpu.memory_space<vmem>>, vector<1x32xf32>
    %19 = vector.broadcast %18 : vector<1x32xf32> to vector<8x32xf32>
    %20 = arith.addf %17, %19 : vector<8x32xf32>
    %21 = vector.extract_strided_slice %10 {offsets = [0, 0], sizes = [8, 8], strides = [1, 1]} : vector<8x32xf32> to vector<8x8xf32>
    %22 = vector.extract_strided_slice %15 {offsets = [0, 0], sizes = [8, 8], strides = [1, 1]} : vector<8x32xf32> to vector<8x8xf32>
    %23 = vector.extract_strided_slice %20 {offsets = [0, 0], sizes = [8, 8], strides = [1, 1]} : vector<8x32xf32> to vector<8x8xf32>
    %cst_22 = arith.constant dense<0.000000e+00> : vector<8x8xf32>
    %24 = tpu.matmul %21, %22, %cst_22 {dimension_numbers = #tpu.dot_dimension_numbers<[1], [1], [0], [0], [0, 0, 1, 0], [], []>} : vector<8x8xf32>, vector<8x8xf32>, vector<8x8xf32> -> vector<8x8xf32>
    %cst_23 = arith.constant 0.353553385 : f32
    %25 = vector.broadcast %cst_23 : f32 to vector<8x8xf32>
    %26 = arith.mulf %24, %25 : vector<8x8xf32>
    %cst_24 = arith.constant dense<0xFF800000> : vector<8xf32>
    %27 = vector.multi_reduction <maximumf>, %26, %cst_24 [1] : vector<8x8xf32> to vector<8xf32>
    %28 = vector.shape_cast %27 : vector<8xf32> to vector<8x1xf32>
    %29 = vector.broadcast %28 : vector<8x1xf32> to vector<8x8xf32>
    %30 = arith.subf %26, %29 : vector<8x8xf32>
    %31 = math.exp %30 : vector<8x8xf32>
    %cst_25 = arith.constant dense<0.000000e+00> : vector<8xf32>
    %32 = vector.multi_reduction <add>, %31, %cst_25 [1] : vector<8x8xf32> to vector<8xf32>
    %33 = vector.shape_cast %32 : vector<8xf32> to vector<8x1xf32>
    %34 = vector.broadcast %33 : vector<8x1xf32> to vector<8x8xf32>
    %35 = arith.divf %31, %34 : vector<8x8xf32>
    %c0_26 = arith.constant 0 : index
    %c0_27 = arith.constant 0 : index
    %c0_28 = arith.constant 0 : index
    %c0_29 = arith.constant 0 : index
    %36 = vector.load %arg15[%c0_26, %c0_27, %c0_28, %c0_29] : memref<4x1x8x8xf32, #tpu.memory_space<vmem>>, vector<1x1x8x8xf32>
    %37 = vector.shape_cast %36 : vector<1x1x8x8xf32> to vector<8x8xf32>
    %38 = vector.shape_cast %35 : vector<8x8xf32> to vector<1x1x8x8xf32>
    tpu.vector_store %arg15[%c0_26, %c0_27, %c0_28, %c0_29], %38 {strides = array<i32>} : memref<4x1x8x8xf32, #tpu.memory_space<vmem>>, vector<1x1x8x8xf32>,
    %cst_30 = arith.constant dense<0.000000e+00> : vector<8x8xf32>
    %39 = tpu.matmul %35, %23, %cst_30 {dimension_numbers = #tpu.dot_dimension_numbers<[1], [0], [0], [1], [0, 0, 1, 1], [], []>} : vector<8x8xf32>, vector<8x8xf32>, vector<8x8xf32> -> vector<8x8xf32>
    %40 = vector.extract_strided_slice %10 {offsets = [0, 8], sizes = [8, 8], strides = [1, 1]} : vector<8x32xf32> to vector<8x8xf32>
    %41 = vector.extract_strided_slice %15 {offsets = [0, 8], sizes = [8, 8], strides = [1, 1]} : vector<8x32xf32> to vector<8x8xf32>
    %42 = vector.extract_strided_slice %20 {offsets = [0, 8], sizes = [8, 8], strides = [1, 1]} : vector<8x32xf32> to vector<8x8xf32>
    %cst_31 = arith.constant dense<0.000000e+00> : vector<8x8xf32>
    %43 = tpu.matmul %40, %41, %cst_31 {dimension_numbers = #tpu.dot_dimension_numbers<[1], [1], [0], [0], [0, 0, 1, 0], [], []>} : vector<8x8xf32>, vector<8x8xf32>, vector<8x8xf32> -> vector<8x8xf32>
    %cst_32 = arith.constant 0.353553385 : f32
    %44 = vector.broadcast %cst_32 : f32 to vector<8x8xf32>
    %45 = arith.mulf %43, %44 : vector<8x8xf32>
    %cst_33 = arith.constant dense<0xFF800000> : vector<8xf32>
    %46 = vector.multi_reduction <maximumf>, %45, %cst_33 [1] : vector<8x8xf32> to vector<8xf32>
    %47 = vector.shape_cast %46 : vector<8xf32> to vector<8x1xf32>
    %48 = vector.broadcast %47 : vector<8x1xf32> to vector<8x8xf32>
    %49 = arith.subf %45, %48 : vector<8x8xf32>
    %50 = math.exp %49 : vector<8x8xf32>
    %cst_34 = arith.constant dense<0.000000e+00> : vector<8xf32>
    %51 = vector.multi_reduction <add>, %50, %cst_34 [1] : vector<8x8xf32> to vector<8xf32>
    %52 = vector.shape_cast %51 : vector<8xf32> to vector<8x1xf32>
    %53 = vector.broadcast %52 : vector<8x1xf32> to vector<8x8xf32>
    %54 = arith.divf %50, %53 : vector<8x8xf32>
    %c1 = arith.constant 1 : index
    %c0_35 = arith.constant 0 : index
    %c0_36 = arith.constant 0 : index
    %c0_37 = arith.constant 0 : index
    %55 = vector.load %arg15[%c1, %c0_35, %c0_36, %c0_37] : memref<4x1x8x8xf32, #tpu.memory_space<vmem>>, vector<1x1x8x8xf32>
    %56 = vector.shape_cast %55 : vector<1x1x8x8xf32> to vector<8x8xf32>
    %57 = vector.shape_cast %54 : vector<8x8xf32> to vector<1x1x8x8xf32>
    tpu.vector_store %arg15[%c1, %c0_35, %c0_36, %c0_37], %57 {strides = array<i32>} : memref<4x1x8x8xf32, #tpu.memory_space<vmem>>, vector<1x1x8x8xf32>,
    %cst_38 = arith.constant dense<0.000000e+00> : vector<8x8xf32>
    %58 = tpu.matmul %54, %42, %cst_38 {dimension_numbers = #tpu.dot_dimension_numbers<[1], [0], [0], [1], [0, 0, 1, 1], [], []>} : vector<8x8xf32>, vector<8x8xf32>, vector<8x8xf32> -> vector<8x8xf32>
    %59 = vector.extract_strided_slice %10 {offsets = [0, 16], sizes = [8, 8], strides = [1, 1]} : vector<8x32xf32> to vector<8x8xf32>
    %60 = vector.extract_strided_slice %15 {offsets = [0, 16], sizes = [8, 8], strides = [1, 1]} : vector<8x32xf32> to vector<8x8xf32>
    %61 = vector.extract_strided_slice %20 {offsets = [0, 16], sizes = [8, 8], strides = [1, 1]} : vector<8x32xf32> to vector<8x8xf32>
    %cst_39 = arith.constant dense<0.000000e+00> : vector<8x8xf32>
    %62 = tpu.matmul %59, %60, %cst_39 {dimension_numbers = #tpu.dot_dimension_numbers<[1], [1], [0], [0], [0, 0, 1, 0], [], []>} : vector<8x8xf32>, vector<8x8xf32>, vector<8x8xf32> -> vector<8x8xf32>
    %cst_40 = arith.constant 0.353553385 : f32
    %63 = vector.broadcast %cst_40 : f32 to vector<8x8xf32>
    %64 = arith.mulf %62, %63 : vector<8x8xf32>
    %cst_41 = arith.constant dense<0xFF800000> : vector<8xf32>
    %65 = vector.multi_reduction <maximumf>, %64, %cst_41 [1] : vector<8x8xf32> to vector<8xf32>
    %66 = vector.shape_cast %65 : vector<8xf32> to vector<8x1xf32>
    %67 = vector.broadcast %66 : vector<8x1xf32> to vector<8x8xf32>
    %68 = arith.subf %64, %67 : vector<8x8xf32>
    %69 = math.exp %68 : vector<8x8xf32>
    %cst_42 = arith.constant dense<0.000000e+00> : vector<8xf32>
    %70 = vector.multi_reduction <add>, %69, %cst_42 [1] : vector<8x8xf32> to vector<8xf32>
    %71 = vector.shape_cast %70 : vector<8xf32> to vector<8x1xf32>
    %72 = vector.broadcast %71 : vector<8x1xf32> to vector<8x8xf32>
    %73 = arith.divf %69, %72 : vector<8x8xf32>
    %c2 = arith.constant 2 : index
    %c0_43 = arith.constant 0 : index
    %c0_44 = arith.constant 0 : index
    %c0_45 = arith.constant 0 : index
    %74 = vector.load %arg15[%c2, %c0_43, %c0_44, %c0_45] : memref<4x1x8x8xf32, #tpu.memory_space<vmem>>, vector<1x1x8x8xf32>
    %75 = vector.shape_cast %74 : vector<1x1x8x8xf32> to vector<8x8xf32>
    %76 = vector.shape_cast %73 : vector<8x8xf32> to vector<1x1x8x8xf32>
    tpu.vector_store %arg15[%c2, %c0_43, %c0_44, %c0_45], %76 {strides = array<i32>} : memref<4x1x8x8xf32, #tpu.memory_space<vmem>>, vector<1x1x8x8xf32>,
    %cst_46 = arith.constant dense<0.000000e+00> : vector<8x8xf32>
    %77 = tpu.matmul %73, %61, %cst_46 {dimension_numbers = #tpu.dot_dimension_numbers<[1], [0], [0], [1], [0, 0, 1, 1], [], []>} : vector<8x8xf32>, vector<8x8xf32>, vector<8x8xf32> -> vector<8x8xf32>
    %78 = vector.extract_strided_slice %10 {offsets = [0, 24], sizes = [8, 8], strides = [1, 1]} : vector<8x32xf32> to vector<8x8xf32>
    %79 = vector.extract_strided_slice %15 {offsets = [0, 24], sizes = [8, 8], strides = [1, 1]} : vector<8x32xf32> to vector<8x8xf32>
    %80 = vector.extract_strided_slice %20 {offsets = [0, 24], sizes = [8, 8], strides = [1, 1]} : vector<8x32xf32> to vector<8x8xf32>
    %cst_47 = arith.constant dense<0.000000e+00> : vector<8x8xf32>
    %81 = tpu.matmul %78, %79, %cst_47 {dimension_numbers = #tpu.dot_dimension_numbers<[1], [1], [0], [0], [0, 0, 1, 0], [], []>} : vector<8x8xf32>, vector<8x8xf32>, vector<8x8xf32> -> vector<8x8xf32>
    %cst_48 = arith.constant 0.353553385 : f32
    %82 = vector.broadcast %cst_48 : f32 to vector<8x8xf32>
    %83 = arith.mulf %81, %82 : vector<8x8xf32>
    %cst_49 = arith.constant dense<0xFF800000> : vector<8xf32>
    %84 = vector.multi_reduction <maximumf>, %83, %cst_49 [1] : vector<8x8xf32> to vector<8xf32>
    %85 = vector.shape_cast %84 : vector<8xf32> to vector<8x1xf32>
    %86 = vector.broadcast %85 : vector<8x1xf32> to vector<8x8xf32>
    %87 = arith.subf %83, %86 : vector<8x8xf32>
    %88 = math.exp %87 : vector<8x8xf32>
    %cst_50 = arith.constant dense<0.000000e+00> : vector<8xf32>
    %89 = vector.multi_reduction <add>, %88, %cst_50 [1] : vector<8x8xf32> to vector<8xf32>
    %90 = vector.shape_cast %89 : vector<8xf32> to vector<8x1xf32>
    %91 = vector.broadcast %90 : vector<8x1xf32> to vector<8x8xf32>
    %92 = arith.divf %88, %91 : vector<8x8xf32>
    %c3 = arith.constant 3 : index
    %c0_51 = arith.constant 0 : index
    %c0_52 = arith.constant 0 : index
    %c0_53 = arith.constant 0 : index
    %93 = vector.load %arg15[%c3, %c0_51, %c0_52, %c0_53] : memref<4x1x8x8xf32, #tpu.memory_space<vmem>>, vector<1x1x8x8xf32>
    %94 = vector.shape_cast %93 : vector<1x1x8x8xf32> to vector<8x8xf32>
    %95 = vector.shape_cast %92 : vector<8x8xf32> to vector<1x1x8x8xf32>
    tpu.vector_store %arg15[%c3, %c0_51, %c0_52, %c0_53], %95 {strides = array<i32>} : memref<4x1x8x8xf32, #tpu.memory_space<vmem>>, vector<1x1x8x8xf32>,
    %cst_54 = arith.constant dense<0.000000e+00> : vector<8x8xf32>
    %96 = tpu.matmul %92, %80, %cst_54 {dimension_numbers = #tpu.dot_dimension_numbers<[1], [0], [0], [1], [0, 0, 1, 1], [], []>} : vector<8x8xf32>, vector<8x8xf32>, vector<8x8xf32> -> vector<8x8xf32>
    %97 = tpu.concatenate %39, %58, %77, %96 in 1 : vector<8x8xf32>, vector<8x8xf32>, vector<8x8xf32>, vector<8x8xf32> -> vector<8x32xf32>
    %c0_55 = arith.constant 0 : index
    %c0_56 = arith.constant 0 : index
    %98 = vector.load %arg10[%c0_55, %c0_56] : memref<32x32xf32, #tpu.memory_space<vmem>>, vector<32x32xf32>
    %cst_57 = arith.constant dense<0.000000e+00> : vector<8x32xf32>
    %99 = tpu.matmul %97, %98, %cst_57 {dimension_numbers = #tpu.dot_dimension_numbers<[1], [0], [0], [1], [0, 0, 1, 1], [], []>} : vector<8x32xf32>, vector<32x32xf32>, vector<8x32xf32> -> vector<8x32xf32>
    %c0_58 = arith.constant 0 : index
    %c0_59 = arith.constant 0 : index
    %100 = vector.load %arg11[%c0_58, %c0_59] : memref<1x32xf32, #tpu.memory_space<vmem>>, vector<1x32xf32>
    %101 = vector.broadcast %100 : vector<1x32xf32> to vector<8x32xf32>
    %102 = arith.addf %99, %101 : vector<8x32xf32>
    %103 = arith.addf %102, %1 : vector<8x32xf32>
    %cst_60 = arith.constant dense<0.000000e+00> : vector<8xf32>
    %104 = vector.multi_reduction <add>, %103, %cst_60 [1] : vector<8x32xf32> to vector<8xf32>
    %105 = vector.shape_cast %104 : vector<8xf32> to vector<8x1xf32>
    %cst_61 = arith.constant 3.200000e+01 : f32
    %106 = vector.broadcast %cst_61 : f32 to vector<8x1xf32>
    %107 = arith.divf %105, %106 : vector<8x1xf32>
    %108 = vector.broadcast %107 : vector<8x1xf32> to vector<8x32xf32>
    %109 = arith.subf %103, %108 : vector<8x32xf32>
    %110 = vector.broadcast %107 : vector<8x1xf32> to vector<8x32xf32>
    %111 = arith.subf %103, %110 : vector<8x32xf32>
    %112 = arith.mulf %109, %111 : vector<8x32xf32>
    %cst_62 = arith.constant dense<0.000000e+00> : vector<8xf32>
    %113 = vector.multi_reduction <add>, %112, %cst_62 [1] : vector<8x32xf32> to vector<8xf32>
    %114 = vector.shape_cast %113 : vector<8xf32> to vector<8x1xf32>
    %cst_63 = arith.constant 3.200000e+01 : f32
    %115 = vector.broadcast %cst_63 : f32 to vector<8x1xf32>
    %116 = arith.divf %114, %115 : vector<8x1xf32>
    %117 = vector.broadcast %107 : vector<8x1xf32> to vector<8x32xf32>
    %118 = arith.subf %103, %117 : vector<8x32xf32>
    %cst_64 = arith.constant 9.99999974E-6 : f32
    %119 = vector.broadcast %cst_64 : f32 to vector<8x1xf32>
    %120 = arith.addf %116, %119 : vector<8x1xf32>
    %121 = math.rsqrt %120 : vector<8x1xf32>
    %122 = vector.broadcast %121 : vector<8x1xf32> to vector<8x32xf32>
    %123 = arith.mulf %118, %122 : vector<8x32xf32>
    %c0_65 = arith.constant 0 : index
    %c0_66 = arith.constant 0 : index
    %124 = vector.load %arg12[%c0_65, %c0_66] : memref<1x32xf32, #tpu.memory_space<vmem>>, vector<1x32xf32>
    %125 = vector.broadcast %124 : vector<1x32xf32> to vector<8x32xf32>
    %126 = arith.mulf %123, %125 : vector<8x32xf32>
    %c0_67 = arith.constant 0 : index
    %c0_68 = arith.constant 0 : index
    %127 = vector.load %arg13[%c0_67, %c0_68] : memref<1x32xf32, #tpu.memory_space<vmem>>, vector<1x32xf32>
    %128 = vector.broadcast %127 : vector<1x32xf32> to vector<8x32xf32>
    %129 = arith.addf %126, %128 : vector<8x32xf32>
    %c0_69 = arith.constant 0 : index
    %c0_70 = arith.constant 0 : index
    %c0_71 = arith.constant 0 : index
    %130 = vector.load %arg14[%c0_69, %c0_70, %c0_71] : memref<1x8x32xf32, #tpu.memory_space<vmem>>, vector<1x8x32xf32>
    %131 = vector.shape_cast %130 : vector<1x8x32xf32> to vector<8x32xf32>
    %132 = vector.shape_cast %129 : vector<8x32xf32> to vector<1x8x32xf32>
    tpu.vector_store %arg14[%c0_69, %c0_70, %c0_71], %132 {strides = array<i32>} : memref<1x8x32xf32, #tpu.memory_space<vmem>>, vector<1x8x32xf32>,
    return
  }
  func.func @transform_0(%arg0: i32) -> (i32, i32, i32) {
    %c0_i32 = arith.constant 0 : i32
    %c0_i32_0 = arith.constant 0 : i32
    %c0_i32_1 = arith.constant 0 : i32
    return %arg0, %c0_i32, %c0_i32_0 : i32, i32, i32
  }
  func.func @transform_1(%arg0: i32) -> (i32, i32, i32) {
    %c0_i32 = arith.constant 0 : i32
    %c0_i32_0 = arith.constant 0 : i32
    %c0_i32_1 = arith.constant 0 : i32
    return %arg0, %c0_i32, %c0_i32_0 : i32, i32, i32
  }
  func.func @transform_2(%arg0: i32) -> (i32, i32, i32) {
    %c0_i32 = arith.constant 0 : i32
    %c0_i32_0 = arith.constant 0 : i32
    %c0_i32_1 = arith.constant 0 : i32
    return %arg0, %c0_i32, %c0_i32_0 : i32, i32, i32
  }
  func.func @transform_3(%arg0: i32) -> (i32, i32) {
    %c0_i32 = arith.constant 0 : i32
    %c0_i32_0 = arith.constant 0 : i32
    %c0_i32_1 = arith.constant 0 : i32
    return %c0_i32, %c0_i32_0 : i32, i32
  }
  func.func @transform_4(%arg0: i32) -> (i32, i32) {
    %c0_i32 = arith.constant 0 : i32
    %c0_i32_0 = arith.constant 0 : i32
    %c0_i32_1 = arith.constant 0 : i32
    return %c0_i32, %c0_i32_0 : i32, i32
  }
  func.func @transform_5(%arg0: i32) -> (i32, i32) {
    %c0_i32 = arith.constant 0 : i32
    %c0_i32_0 = arith.constant 0 : i32
    %c0_i32_1 = arith.constant 0 : i32
    return %c0_i32, %c0_i32_0 : i32, i32
  }
  func.func @transform_6(%arg0: i32) -> (i32, i32) {
    %c0_i32 = arith.constant 0 : i32
    %c0_i32_0 = arith.constant 0 : i32
    %c0_i32_1 = arith.constant 0 : i32
    return %c0_i32, %c0_i32_0 : i32, i32
  }
  func.func @transform_7(%arg0: i32) -> (i32, i32) {
    %c0_i32 = arith.constant 0 : i32
    %c0_i32_0 = arith.constant 0 : i32
    %c0_i32_1 = arith.constant 0 : i32
    return %c0_i32, %c0_i32_0 : i32, i32
  }
  func.func @transform_8(%arg0: i32) -> (i32, i32) {
    %c0_i32 = arith.constant 0 : i32
    %c0_i32_0 = arith.constant 0 : i32
    %c0_i32_1 = arith.constant 0 : i32
    return %c0_i32, %c0_i32_0 : i32, i32
  }
  func.func @transform_9(%arg0: i32) -> (i32, i32) {
    %c0_i32 = arith.constant 0 : i32
    %c0_i32_0 = arith.constant 0 : i32
    %c0_i32_1 = arith.constant 0 : i32
    return %c0_i32, %c0_i32_0 : i32, i32
  }
  func.func @transform_10(%arg0: i32) -> (i32, i32) {
    %c0_i32 = arith.constant 0 : i32
    %c0_i32_0 = arith.constant 0 : i32
    %c0_i32_1 = arith.constant 0 : i32
    return %c0_i32, %c0_i32_0 : i32, i32
  }
  func.func @transform_11(%arg0: i32) -> (i32, i32) {
    %c0_i32 = arith.constant 0 : i32
    %c0_i32_0 = arith.constant 0 : i32
    %c0_i32_1 = arith.constant 0 : i32
    return %c0_i32, %c0_i32_0 : i32, i32
  }
  func.func @transform_12(%arg0: i32) -> (i32, i32) {
    %c0_i32 = arith.constant 0 : i32
    %c0_i32_0 = arith.constant 0 : i32
    %c0_i32_1 = arith.constant 0 : i32
    return %c0_i32, %c0_i32_0 : i32, i32
  }
  func.func @transform_13(%arg0: i32) -> (i32, i32, i32) {
    %c0_i32 = arith.constant 0 : i32
    %c0_i32_0 = arith.constant 0 : i32
    %c0_i32_1 = arith.constant 0 : i32
    return %arg0, %c0_i32, %c0_i32_0 : i32, i32, i32
  }
  func.func @transform_14(%arg0: i32) -> (i32, i32, i32, i32) {
    %c0_i32 = arith.constant 0 : i32
    %c0_i32_0 = arith.constant 0 : i32
    %c0_i32_1 = arith.constant 0 : i32
    %c0_i32_2 = arith.constant 0 : i32
    return %c0_i32, %arg0, %c0_i32_0, %c0_i32_1 : i32, i32, i32, i32
  }
}

</mosaic_0001>

<llo_original>
// kernel: tpu_custom_call.1
$region0: #{tpu_custom_call.1}
  #allocation0 [shape = 'u32[]', space=smem, size = 0x4, offset = 0x4, fixed_abs, tag = 'smem constant byte address 0x4 - core index']
  #allocation1 [shape = 'u32[72,128]{1,0:T(1,128)}', space=vmem, size = 0x9000, scoped, tag = 'internal scratch']
  %s0 = inlined_call_operand.hbm [shape: f32[2,8,32], index: 0, kind: input, shape index: {}]
  %s1 = inlined_call_operand.hbm [shape: f32[2,8,32], index: 1, kind: input, shape index: {}]
  %s2 = inlined_call_operand.hbm [shape: f32[2,8,32], index: 2, kind: input, shape index: {}]
  %s3 = inlined_call_operand.hbm [shape: f32[32,32], index: 3, kind: input, shape index: {}]
  %s4 = inlined_call_operand.vmem [shape: f32[1,32], index: 4, kind: input, shape index: {}]
  %s5 = inlined_call_operand.hbm [shape: f32[32,32], index: 5, kind: input, shape index: {}]
  %s6 = inlined_call_operand.vmem [shape: f32[1,32], index: 6, kind: input, shape index: {}]
  %s7 = inlined_call_operand.hbm [shape: f32[32,32], index: 7, kind: input, shape index: {}]
  %s8 = inlined_call_operand.vmem [shape: f32[1,32], index: 8, kind: input, shape index: {}]
  %s9 = inlined_call_operand.hbm [shape: f32[32,32], index: 9, kind: input, shape index: {}]
  %s10 = inlined_call_operand.vmem [shape: f32[1,32], index: 10, kind: input, shape index: {}]
  %s11 = inlined_call_operand.vmem [shape: f32[1,32], index: 11, kind: input, shape index: {}]
  %s12 = inlined_call_operand.vmem [shape: f32[1,32], index: 12, kind: input, shape index: {}]
  %s13 = inlined_call_operand.hbm [shape: f32[2,8,32], index: 13, kind: output, shape index: {0}]
  %s14 = inlined_call_operand.hbm [shape: f32[4,2,8,8], index: 14, kind: output, shape index: {1}]
  %15 = xla_tuple %s13, %s14
  %s16 = sld [smem:[#allocation0]]
  $region121: #{tpu_custom_call.1} parent=0
    _
  %s18 = ssub.s32 1, %s16
  %s19 = scalar_select 0, %s18, %s16
  $region1: #{tpu_custom_call.1} parent=0
    #allocation2 [shape = 'u8[8192]{0}', space=vmem, size = 0x2000, scoped, tag = 'input window, operand 0']
    #allocation3 [shape = 's32[2]{0}', space=sflag, size = 0x8, scoped, tag = 'scoped memory for tpu_custom_call.1']
    #allocation4 [shape = 's32[2]{0}', space=sflag, size = 0x8, scoped, tag = 'scoped memory for tpu_custom_call.1']
    #allocation5 [shape = 'u8[8192]{0}', space=vmem, size = 0x2000, scoped, tag = 'input window, operand 1']
    #allocation6 [shape = 's32[2]{0}', space=sflag, size = 0x8, scoped, tag = 'scoped memory for tpu_custom_call.1']
    #allocation7 [shape = 'u8[8192]{0}', space=vmem, size = 0x2000, scoped, tag = 'input window, operand 2']
    #allocation8 [shape = 'u8[16384]{0}', space=vmem, size = 0x4000, scoped, tag = 'input window, operand 3, single buffered']
    #allocation9 [shape = 's32[1]{0}', space=sflag, size = 0x4, scoped, tag = 'scoped memory for tpu_custom_call.1']
    #allocation10 [shape = 'u8[16384]{0}', space=vmem, size = 0x4000, scoped, tag = 'input window, operand 5, single buffered']
    #allocation11 [shape = 'u8[16384]{0}', space=vmem, size = 0x4000, scoped, tag = 'input window, operand 7, single buffered']
    #allocation12 [shape = 's32[1]{0}', space=sflag, size = 0x4, scoped, tag = 'scoped memory for tpu_custom_call.1']
    #allocation13 [shape = 'u8[16384]{0}', space=vmem, size = 0x4000, scoped, tag = 'input window, operand 9, single buffered']
    #allocation14 [shape = 'u8[8192]{0}', space=vmem, size = 0x2000, scoped, tag = 'output window, operand 0']
    #allocation15 [shape = 'u8[32768]{0}', space=vmem, size = 0x8000, scoped, tag = 'output window, operand 1']
    #allocation16 [shape = 's32[2]{0}', space=sflag, size = 0x8, scoped, tag = 'scoped memory for tpu_custom_call.1']
    %20 = vsyncpa [#allocation3], 0
    %s21 = scalar_lea.sflag [#allocation3], 1
    %22 = vsyncpa %s21, 0
    %23 = vsyncpa [#allocation6], 0
    %s24 = scalar_lea.sflag [#allocation6], 1
    %25 = vsyncpa %s24, 0
    %26 = vsyncpa [#allocation9], 0
    %27 = vsyncpa [#allocation12], 0
    %28 = vsyncpa [#allocation4], 0
    %s29 = scalar_lea.sflag [#allocation4], 1
    %30 = vsyncpa %s29, 0
    %31 = vsyncpa [#allocation16], 0
    %s32 = scalar_lea.sflag [#allocation16], 1
    %33 = vsyncpa %s32, 0
    loop: start=0, step=1, limit=4
    $region2: #{tpu_custom_call.1} parent=1 // loop_pre_header
      _
    $region3: #{tpu_custom_call.1} parent=1 // loop_header
      %s35 = sphi 0, %s39
      %p36 = scmp.ge.s32.totalorder %s35, 4
      %s45 = sphi 0, %s47
      %s48 = sphi 0, %s45
      %s49 = sphi 0, %s48
      %s65 = sphi 0, %s49
      %s71 = sphi 0, %s73
      %s74 = sphi 0, %s71
      %s75 = sphi 0, %s74
      %s91 = sphi 0, %s75
      %s97 = sphi 0, %s99
      %s100 = sphi 0, %s97
      %s101 = sphi 0, %s100
      %s117 = sphi 0, %s101
      %s121 = sphi 0, %s121
      %s123 = sphi 0, %s121
      %s124 = sphi 0, %s123
      %s138 = sphi 0, %s124
      %s142 = sphi 0, %s142
      %s144 = sphi 0, %s142
      %s145 = sphi 0, %s144
      %s159 = sphi 0, %s145
      %s163 = sphi 0, %s163
      %s165 = sphi 0, %s163
      %s166 = sphi 0, %s165
      %s180 = sphi 0, %s166
      %s184 = sphi 0, %s184
      %s186 = sphi 0, %s184
      %s187 = sphi 0, %s186
      %s201 = sphi 0, %s187
      %s205 = sphi 0, %s205
      %s207 = sphi 0, %s205
      %s208 = sphi 0, %s207
      %s222 = sphi 0, %s208
      %s226 = sphi 0, %s226
      %s228 = sphi 0, %s226
      %s229 = sphi 0, %s228
      %s243 = sphi 0, %s229
      %s247 = sphi 0, %s247
      %s249 = sphi 0, %s247
      %s250 = sphi 0, %s249
      %s264 = sphi 0, %s250
      %s268 = sphi 0, %s268
      %s270 = sphi 0, %s268
      %s271 = sphi 0, %s270
      %s285 = sphi 0, %s271
      %s289 = sphi 0, %s289
      %s291 = sphi 0, %s289
      %s292 = sphi 0, %s291
      %s306 = sphi 0, %s292
      %s310 = sphi 0, %s310
      %s312 = sphi 0, %s310
      %s313 = sphi 0, %s312
      %s327 = sphi 0, %s313
      %s333 = sphi 0, %s335
      %s336 = sphi 0, %s333
      %s337 = sphi 0, %s336
      %s353 = sphi 0, %s337
      %s359 = sphi 0, %s361
      %s362 = sphi 0, %s359
      %s363 = sphi 0, %s362
      %s379 = sphi 0, %s363
    $region4: #{tpu_custom_call.1} parent=1 // loop_header_branch
      %38 = sbr.rel (%p36) target = $region8
    $region5: #{tpu_custom_call.1} parent=1 // loop_body
      %s40 = ssub.s32 %s35, 1
      %s41 = ssub.s32 %s35, 2
      %s42 = sadd.s32 %s35, 1
      %s43 = ssub.s32 %s35, %s42
      %p44 = scmp.eq.s32.totalorder %s43, 0
      %s46 = sadd.s32 %s45, 1
      %s47 = scalar_select %p44, %s45, %s46
      %p50 = pneg %p44
      %p51 = scmp.eq.s32.totalorder %s35, 1
      %p52 = por %p50, %p51
      %p53 = scmp.ne.s32.totalorder %s45, %s48
      %p54 = scmp.eq.s32.totalorder %s35, 0
      %p55 = por %p53, %p54
      %p56 = scmp.ne.s32.totalorder %s45, %s48
      %p57 = scmp.eq.s32.totalorder %s40, 1
      %p58 = por %p56, %p57
      %p59 = scmp.ne.s32.totalorder %s48, %s49
      %p60 = scmp.eq.s32.totalorder %s40, 0
      %p61 = por %p59, %p60
      %p62 = scmp.ne.s32.totalorder %s48, %s49
      %p63 = scmp.eq.s32.totalorder %s41, 1
      %p64 = por %p62, %p63
      %p66 = scmp.ne.s32.totalorder %s49, %s65
      %p67 = scmp.eq.s32.totalorder %s41, 0
      %p68 = por %p66, %p67
      %s69 = ssub.s32 %s35, %s42
      %p70 = scmp.eq.s32.totalorder %s69, 0
      %s72 = sadd.s32 %s71, 1
      %s73 = scalar_select %p70, %s71, %s72
      %p76 = pneg %p70
      %p77 = scmp.eq.s32.totalorder %s35, 1
      %p78 = por %p76, %p77
      %p79 = scmp.ne.s32.totalorder %s71, %s74
      %p80 = scmp.eq.s32.totalorder %s35, 0
      %p81 = por %p79, %p80
      %p82 = scmp.ne.s32.totalorder %s71, %s74
      %p83 = scmp.eq.s32.totalorder %s40, 1
      %p84 = por %p82, %p83
      %p85 = scmp.ne.s32.totalorder %s74, %s75
      %p86 = scmp.eq.s32.totalorder %s40, 0
      %p87 = por %p85, %p86
      %p88 = scmp.ne.s32.totalorder %s74, %s75
      %p89 = scmp.eq.s32.totalorder %s41, 1
      %p90 = por %p88, %p89
      %p92 = scmp.ne.s32.totalorder %s75, %s91
      %p93 = scmp.eq.s32.totalorder %s41, 0
      %p94 = por %p92, %p93
      %s95 = ssub.s32 %s35, %s42
      %p96 = scmp.eq.s32.totalorder %s95, 0
      %s98 = sadd.s32 %s97, 1
      %s99 = scalar_select %p96, %s97, %s98
      %p102 = pneg %p96
      %p103 = scmp.eq.s32.totalorder %s35, 1
      %p104 = por %p102, %p103
      %p105 = scmp.ne.s32.totalorder %s97, %s100
      %p106 = scmp.eq.s32.totalorder %s35, 0
      %p107 = por %p105, %p106
      %p108 = scmp.ne.s32.totalorder %s97, %s100
      %p109 = scmp.eq.s32.totalorder %s40, 1
      %p110 = por %p108, %p109
      %p111 = scmp.ne.s32.totalorder %s100, %s101
      %p112 = scmp.eq.s32.totalorder %s40, 0
      %p113 = por %p111, %p112
      %p114 = scmp.ne.s32.totalorder %s100, %s101
      %p115 = scmp.eq.s32.totalorder %s41, 1
      %p116 = por %p114, %p115
      %p118 = scmp.ne.s32.totalorder %s101, %s117
      %p119 = scmp.eq.s32.totalorder %s41, 0
      %p120 = por %p118, %p119
      %s122 = sadd.s32 %s121, 1
      %p125 = scmp.eq.s32.totalorder %s35, 1
      %p126 = scmp.ne.s32.totalorder %s121, %s123
      %p127 = scmp.eq.s32.totalorder %s35, 0
      %p128 = por %p126, %p127
      %p129 = scmp.ne.s32.totalorder %s121, %s123
      %p130 = scmp.eq.s32.totalorder %s40, 1
      %p131 = por %p129, %p130
      %p132 = scmp.ne.s32.totalorder %s123, %s124
      %p133 = scmp.eq.s32.totalorder %s40, 0
      %p134 = por %p132, %p133
      %p135 = scmp.ne.s32.totalorder %s123, %s124
      %p136 = scmp.eq.s32.totalorder %s41, 1
      %p137 = por %p135, %p136
      %p139 = scmp.ne.s32.totalorder %s124, %s138
      %p140 = scmp.eq.s32.totalorder %s41, 0
      %p141 = por %p139, %p140
      %s143 = sadd.s32 %s142, 1
      %p146 = scmp.eq.s32.totalorder %s35, 1
      %p147 = scmp.ne.s32.totalorder %s142, %s144
      %p148 = scmp.eq.s32.totalorder %s35, 0
      %p149 = por %p147, %p148
      %p150 = scmp.ne.s32.totalorder %s142, %s144
      %p151 = scmp.eq.s32.totalorder %s40, 1
      %p152 = por %p150, %p151
      %p153 = scmp.ne.s32.totalorder %s144, %s145
      %p154 = scmp.eq.s32.totalorder %s40, 0
      %p155 = por %p153, %p154
      %p156 = scmp.ne.s32.totalorder %s144, %s145
      %p157 = scmp.eq.s32.totalorder %s41, 1
      %p158 = por %p156, %p157
      %p160 = scmp.ne.s32.totalorder %s145, %s159
      %p161 = scmp.eq.s32.totalorder %s41, 0
      %p162 = por %p160, %p161
      %s164 = sadd.s32 %s163, 1
      %p167 = scmp.eq.s32.totalorder %s35, 1
      %p168 = scmp.ne.s32.totalorder %s163, %s165
      %p169 = scmp.eq.s32.totalorder %s35, 0
      %p170 = por %p168, %p169
      %p171 = scmp.ne.s32.totalorder %s163, %s165
      %p172 = scmp.eq.s32.totalorder %s40, 1
      %p173 = por %p171, %p172
      %p174 = scmp.ne.s32.totalorder %s165, %s166
      %p175 = scmp.eq.s32.totalorder %s40, 0
      %p176 = por %p174, %p175
      %p177 = scmp.ne.s32.totalorder %s165, %s166
      %p178 = scmp.eq.s32.totalorder %s41, 1
      %p179 = por %p177, %p178
      %p181 = scmp.ne.s32.totalorder %s166, %s180
      %p182 = scmp.eq.s32.totalorder %s41, 0
      %p183 = por %p181, %p182
      %s185 = sadd.s32 %s184, 1
      %p188 = scmp.eq.s32.totalorder %s35, 1
      %p189 = scmp.ne.s32.totalorder %s184, %s186
      %p190 = scmp.eq.s32.totalorder %s35, 0
      %p191 = por %p189, %p190
      %p192 = scmp.ne.s32.totalorder %s184, %s186
      %p193 = scmp.eq.s32.totalorder %s40, 1
      %p194 = por %p192, %p193
      %p195 = scmp.ne.s32.totalorder %s186, %s187
      %p196 = scmp.eq.s32.totalorder %s40, 0
      %p197 = por %p195, %p196
      %p198 = scmp.ne.s32.totalorder %s186, %s187
      %p199 = scmp.eq.s32.totalorder %s41, 1
      %p200 = por %p198, %p199
      %p202 = scmp.ne.s32.totalorder %s187, %s201
      %p203 = scmp.eq.s32.totalorder %s41, 0
      %p204 = por %p202, %p203
      %s206 = sadd.s32 %s205, 1
      %p209 = scmp.eq.s32.totalorder %s35, 1
      %p210 = scmp.ne.s32.totalorder %s205, %s207
      %p211 = scmp.eq.s32.totalorder %s35, 0
      %p212 = por %p210, %p211
      %p213 = scmp.ne.s32.totalorder %s205, %s207
      %p214 = scmp.eq.s32.totalorder %s40, 1
      %p215 = por %p213, %p214
      %p216 = scmp.ne.s32.totalorder %s207, %s208
      %p217 = scmp.eq.s32.totalorder %s40, 0
      %p218 = por %p216, %p217
      %p219 = scmp.ne.s32.totalorder %s207, %s208
      %p220 = scmp.eq.s32.totalorder %s41, 1
      %p221 = por %p219, %p220
      %p223 = scmp.ne.s32.totalorder %s208, %s222
      %p224 = scmp.eq.s32.totalorder %s41, 0
      %p225 = por %p223, %p224
      %s227 = sadd.s32 %s226, 1
      %p230 = scmp.eq.s32.totalorder %s35, 1
      %p231 = scmp.ne.s32.totalorder %s226, %s228
      %p232 = scmp.eq.s32.totalorder %s35, 0
      %p233 = por %p231, %p232
      %p234 = scmp.ne.s32.totalorder %s226, %s228
      %p235 = scmp.eq.s32.totalorder %s40, 1
      %p236 = por %p234, %p235
      %p237 = scmp.ne.s32.totalorder %s228, %s229
      %p238 = scmp.eq.s32.totalorder %s40, 0
      %p239 = por %p237, %p238
      %p240 = scmp.ne.s32.totalorder %s228, %s229
      %p241 = scmp.eq.s32.totalorder %s41, 1
      %p242 = por %p240, %p241
      %p244 = scmp.ne.s32.totalorder %s229, %s243
      %p245 = scmp.eq.s32.totalorder %s41, 0
      %p246 = por %p244, %p245
      %s248 = sadd.s32 %s247, 1
      %p251 = scmp.eq.s32.totalorder %s35, 1
      %p252 = scmp.ne.s32.totalorder %s247, %s249
      %p253 = scmp.eq.s32.totalorder %s35, 0
      %p254 = por %p252, %p253
      %p255 = scmp.ne.s32.totalorder %s247, %s249
      %p256 = scmp.eq.s32.totalorder %s40, 1
      %p257 = por %p255, %p256
      %p258 = scmp.ne.s32.totalorder %s249, %s250
      %p259 = scmp.eq.s32.totalorder %s40, 0
      %p260 = por %p258, %p259
      %p261 = scmp.ne.s32.totalorder %s249, %s250
      %p262 = scmp.eq.s32.totalorder %s41, 1
      %p263 = por %p261, %p262
      %p265 = scmp.ne.s32.totalorder %s250, %s264
      %p266 = scmp.eq.s32.totalorder %s41, 0
      %p267 = por %p265, %p266
      %s269 = sadd.s32 %s268, 1
      %p272 = scmp.eq.s32.totalorder %s35, 1
      %p273 = scmp.ne.s32.totalorder %s268, %s270
      %p274 = scmp.eq.s32.totalorder %s35, 0
      %p275 = por %p273, %p274
      %p276 = scmp.ne.s32.totalorder %s268, %s270
      %p277 = scmp.eq.s32.totalorder %s40, 1
      %p278 = por %p276, %p277
      %p279 = scmp.ne.s32.totalorder %s270, %s271
      %p280 = scmp.eq.s32.totalorder %s40, 0
      %p281 = por %p279, %p280
      %p282 = scmp.ne.s32.totalorder %s270, %s271
      %p283 = scmp.eq.s32.totalorder %s41, 1
      %p284 = por %p282, %p283
      %p286 = scmp.ne.s32.totalorder %s271, %s285
      %p287 = scmp.eq.s32.totalorder %s41, 0
      %p288 = por %p286, %p287
      %s290 = sadd.s32 %s289, 1
      %p293 = scmp.eq.s32.totalorder %s35, 1
      %p294 = scmp.ne.s32.totalorder %s289, %s291
      %p295 = scmp.eq.s32.totalorder %s35, 0
      %p296 = por %p294, %p295
      %p297 = scmp.ne.s32.totalorder %s289, %s291
      %p298 = scmp.eq.s32.totalorder %s40, 1
      %p299 = por %p297, %p298
      %p300 = scmp.ne.s32.totalorder %s291, %s292
      %p301 = scmp.eq.s32.totalorder %s40, 0
      %p302 = por %p300, %p301
      %p303 = scmp.ne.s32.totalorder %s291, %s292
      %p304 = scmp.eq.s32.totalorder %s41, 1
      %p305 = por %p303, %p304
      %p307 = scmp.ne.s32.totalorder %s292, %s306
      %p308 = scmp.eq.s32.totalorder %s41, 0
      %p309 = por %p307, %p308
      %s311 = sadd.s32 %s310, 1
      %p314 = scmp.eq.s32.totalorder %s35, 1
      %p315 = scmp.ne.s32.totalorder %s310, %s312
      %p316 = scmp.eq.s32.totalorder %s35, 0
      %p317 = por %p315, %p316
      %p318 = scmp.ne.s32.totalorder %s310, %s312
      %p319 = scmp.eq.s32.totalorder %s40, 1
      %p320 = por %p318, %p319
      %p321 = scmp.ne.s32.totalorder %s312, %s313
      %p322 = scmp.eq.s32.totalorder %s40, 0
      %p323 = por %p321, %p322
      %p324 = scmp.ne.s32.totalorder %s312, %s313
      %p325 = scmp.eq.s32.totalorder %s41, 1
      %p326 = por %p324, %p325
      %p328 = scmp.ne.s32.totalorder %s313, %s327
      %p329 = scmp.eq.s32.totalorder %s41, 0
      %p330 = por %p328, %p329
      %s331 = ssub.s32 %s35, %s42
      %p332 = scmp.eq.s32.totalorder %s331, 0
      %s334 = sadd.s32 %s333, 1
      %s335 = scalar_select %p332, %s333, %s334
      %p338 = pneg %p332
      %p339 = scmp.eq.s32.totalorder %s35, 1
      %p340 = por %p338, %p339
      %p341 = scmp.ne.s32.totalorder %s333, %s336
      %p342 = scmp.eq.s32.totalorder %s35, 0
      %p343 = por %p341, %p342
      %p344 = scmp.ne.s32.totalorder %s333, %s336
      %p345 = scmp.eq.s32.totalorder %s40, 1
      %p346 = por %p344, %p345
      %p347 = scmp.ne.s32.totalorder %s336, %s337
      %p348 = scmp.eq.s32.totalorder %s40, 0
      %p349 = por %p347, %p348
      %p350 = scmp.ne.s32.totalorder %s336, %s337
      %p351 = scmp.eq.s32.totalorder %s41, 1
      %p352 = por %p350, %p351
      %p354 = scmp.ne.s32.totalorder %s337, %s353
      %p355 = scmp.eq.s32.totalorder %s41, 0
      %p356 = por %p354, %p355
      %s357 = ssub.s32 %s35, %s42
      %p358 = scmp.eq.s32.totalorder %s357, 0
      %s360 = sadd.s32 %s359, 1
      %s361 = scalar_select %p358, %s359, %s360
      %p364 = pneg %p358
      %p365 = scmp.eq.s32.totalorder %s35, 1
      %p366 = por %p364, %p365
      %p367 = scmp.ne.s32.totalorder %s359, %s362
      %p368 = scmp.eq.s32.totalorder %s35, 0
      %p369 = por %p367, %p368
      %p370 = scmp.ne.s32.totalorder %s359, %s362
      %p371 = scmp.eq.s32.totalorder %s40, 1
      %p372 = por %p370, %p371
      %p373 = scmp.ne.s32.totalorder %s362, %s363
      %p374 = scmp.eq.s32.totalorder %s40, 0
      %p375 = por %p373, %p374
      %p376 = scmp.ne.s32.totalorder %s362, %s363
      %p377 = scmp.eq.s32.totalorder %s41, 1
      %p378 = por %p376, %p377
      %p380 = scmp.ne.s32.totalorder %s363, %s379
      %p381 = scmp.eq.s32.totalorder %s41, 0
      %p382 = por %p380, %p381
      %p383 = scmp.le.s32.totalorder 1, %s35
      %p384 = scmp.lt.s32.totalorder %s35, 3
      %p385 = pnand %p383, %p384
      %p386 = pneg %p385
      // Predicated region
      $region9: #{tpu_custom_call.1} parent=5 // pred_check
        _
      $region10: #{tpu_custom_call.1} parent=5 // pred_check_branch
        %388 = sbr.rel (%p385) target = $region12
      $region11: #{tpu_custom_call.1} parent=5 // pred_region
        %s389 = ssub.s32 %s35, 1
        // Predicated region
        $region13: #{tpu_custom_call.1} parent=11 // pred_check
          %p390 = pneg %p134
        $region14: #{tpu_custom_call.1} parent=11 // pred_check_branch
          %392 = sbr.rel (%p390) target = $region16
        $region15: #{tpu_custom_call.1} parent=11 // pred_region
          %394 = vsyncadd [#allocation9], 0
          %s395 = sshll.u32 %s3, 4
          %s396 = int_to_ptr.hbm [resolvable:$true] %s395
          %s397 = sshll.u32 [#allocation8], 4
          %s398 = int_to_ptr.vmem [resolvable:$true] %s397
          %403 = dma.hbm_to_vmem [thread:$0]  %s396, 512, %s398, [#allocation9], 128, 128, 8
        $region16: #{tpu_custom_call.1} parent=11 // pred_fallthru
          _
        // Predicated region
        $region17: #{tpu_custom_call.1} parent=11 // pred_check
          %p404 = pneg %p155
        $region18: #{tpu_custom_call.1} parent=11 // pred_check_branch
          %406 = sbr.rel (%p404) target = $region20
        $region19: #{tpu_custom_call.1} parent=11 // pred_region
          _
        $region20: #{tpu_custom_call.1} parent=11 // pred_fallthru
          _
        // Predicated region
        $region21: #{tpu_custom_call.1} parent=11 // pred_check
          %p407 = pneg %p176
        $region22: #{tpu_custom_call.1} parent=11 // pred_check_branch
          %409 = sbr.rel (%p407) target = $region24
        $region23: #{tpu_custom_call.1} parent=11 // pred_region
          %411 = vsyncadd [#allocation9], 0
          %s412 = sshll.u32 %s5, 4
          %s413 = int_to_ptr.hbm [resolvable:$true] %s412
          %s414 = sshll.u32 [#allocation10], 4
          %s415 = int_to_ptr.vmem [resolvable:$true] %s414
          %420 = dma.hbm_to_vmem [thread:$0]  %s413, 512, %s415, [#allocation9], 128, 128, 8
        $region24: #{tpu_custom_call.1} parent=11 // pred_fallthru
          _
        // Predicated region
        $region25: #{tpu_custom_call.1} parent=11 // pred_check
          %p421 = pneg %p197
        $region26: #{tpu_custom_call.1} parent=11 // pred_check_branch
          %423 = sbr.rel (%p421) target = $region28
        $region27: #{tpu_custom_call.1} parent=11 // pred_region
          _
        $region28: #{tpu_custom_call.1} parent=11 // pred_fallthru
          _
        // Predicated region
        $region29: #{tpu_custom_call.1} parent=11 // pred_check
          %p424 = pneg %p218
        $region30: #{tpu_custom_call.1} parent=11 // pred_check_branch
          %426 = sbr.rel (%p424) target = $region32
        $region31: #{tpu_custom_call.1} parent=11 // pred_region
          %428 = vsyncadd [#allocation12], 0
          %s429 = sshll.u32 %s7, 4
          %s430 = int_to_ptr.hbm [resolvable:$true] %s429
          %s431 = sshll.u32 [#allocation11], 4
          %s432 = int_to_ptr.vmem [resolvable:$true] %s431
          %437 = dma.hbm_to_vmem [thread:$0]  %s430, 512, %s432, [#allocation12], 128, 128, 8
        $region32: #{tpu_custom_call.1} parent=11 // pred_fallthru
          _
        // Predicated region
        $region33: #{tpu_custom_call.1} parent=11 // pred_check
          %p438 = pneg %p239
        $region34: #{tpu_custom_call.1} parent=11 // pred_check_branch
          %440 = sbr.rel (%p438) target = $region36
        $region35: #{tpu_custom_call.1} parent=11 // pred_region
          _
        $region36: #{tpu_custom_call.1} parent=11 // pred_fallthru
          _
        // Predicated region
        $region37: #{tpu_custom_call.1} parent=11 // pred_check
          %p441 = pneg %p260
        $region38: #{tpu_custom_call.1} parent=11 // pred_check_branch
          %443 = sbr.rel (%p441) target = $region40
        $region39: #{tpu_custom_call.1} parent=11 // pred_region
          %445 = vsyncadd [#allocation12], 0
          %s446 = sshll.u32 %s9, 4
          %s447 = int_to_ptr.hbm [resolvable:$true] %s446
          %s448 = sshll.u32 [#allocation13], 4
          %s449 = int_to_ptr.vmem [resolvable:$true] %s448
          %454 = dma.hbm_to_vmem [thread:$0]  %s447, 512, %s449, [#allocation12], 128, 128, 8
        $region40: #{tpu_custom_call.1} parent=11 // pred_fallthru
          _
        // Predicated region
        $region41: #{tpu_custom_call.1} parent=11 // pred_check
          %p455 = pneg %p281
        $region42: #{tpu_custom_call.1} parent=11 // pred_check_branch
          %457 = sbr.rel (%p455) target = $region44
        $region43: #{tpu_custom_call.1} parent=11 // pred_region
          _
        $region44: #{tpu_custom_call.1} parent=11 // pred_fallthru
          _
        // Predicated region
        $region45: #{tpu_custom_call.1} parent=11 // pred_check
          %p458 = pneg %p302
        $region46: #{tpu_custom_call.1} parent=11 // pred_check_branch
          %460 = sbr.rel (%p458) target = $region48
        $region47: #{tpu_custom_call.1} parent=11 // pred_region
          _
        $region48: #{tpu_custom_call.1} parent=11 // pred_fallthru
          _
        // Predicated region
        $region49: #{tpu_custom_call.1} parent=11 // pred_check
          %p461 = pneg %p323
        $region50: #{tpu_custom_call.1} parent=11 // pred_check_branch
          %463 = sbr.rel (%p461) target = $region52
        $region51: #{tpu_custom_call.1} parent=11 // pred_region
          _
        $region52: #{tpu_custom_call.1} parent=11 // pred_fallthru
          _
      $region12: #{tpu_custom_call.1} parent=5 // pred_fallthru
        _
      %p464 = scmp.lt.s32.totalorder %s35, 2
      // Predicated region
      $region53: #{tpu_custom_call.1} parent=5 // pred_check
        %p465 = pneg %p464
      $region54: #{tpu_custom_call.1} parent=5 // pred_check_branch
        %467 = sbr.rel (%p465) target = $region56
      $region55: #{tpu_custom_call.1} parent=5 // pred_region
        // Predicated region
        $region57: #{tpu_custom_call.1} parent=55 // pred_check
          %p468 = pneg %p55
        $region58: #{tpu_custom_call.1} parent=55 // pred_check_branch
          %470 = sbr.rel (%p468) target = $region60
        $region59: #{tpu_custom_call.1} parent=55 // pred_region
          %s471 = sand.u32 %s45, 1
          %s472 = scalar_lea.sflag [#allocation3], %s471
          %s473 = sand.u32 %s45, 1
          %s474 = smul.addr %s473, 8
          %s475 = scalar_lea.vmem [#allocation2], %s474
          %477 = vsyncadd %s472, 0
          %s478 = smul.addr %s35, 8
          %s479 = scalar_lea.hbm %s0, %s478
          %s481 = sshll.u32 %s479, 4
          %s482 = int_to_ptr.hbm [resolvable:$true] %s481
          %s483 = sshll.u32 %s475, 4
          %s484 = int_to_ptr.vmem [resolvable:$true] %s483
          %486 = dma.hbm_to_vmem [thread:$0]  %s482, 128, %s484, %s472
        $region60: #{tpu_custom_call.1} parent=55 // pred_fallthru
          _
        // Predicated region
        $region61: #{tpu_custom_call.1} parent=55 // pred_check
          %p487 = pneg %p81
        $region62: #{tpu_custom_call.1} parent=55 // pred_check_branch
          %489 = sbr.rel (%p487) target = $region64
        $region63: #{tpu_custom_call.1} parent=55 // pred_region
          %s490 = sand.u32 %s35, 1
          %s491 = scalar_lea.sflag [#allocation6], %s490
          %s492 = sand.u32 %s71, 1
          %s493 = smul.addr %s492, 8
          %s494 = scalar_lea.vmem [#allocation5], %s493
          %496 = vsyncadd %s491, 0
          %s497 = smul.addr %s35, 8
          %s498 = scalar_lea.hbm %s1, %s497
          %s500 = sshll.u32 %s498, 4
          %s501 = int_to_ptr.hbm [resolvable:$true] %s500
          %s502 = sshll.u32 %s494, 4
          %s503 = int_to_ptr.vmem [resolvable:$true] %s502
          %505 = dma.hbm_to_vmem [thread:$0]  %s501, 128, %s503, %s491
        $region64: #{tpu_custom_call.1} parent=55 // pred_fallthru
          _
        // Predicated region
        $region65: #{tpu_custom_call.1} parent=55 // pred_check
          %p506 = pneg %p107
        $region66: #{tpu_custom_call.1} parent=55 // pred_check_branch
          %508 = sbr.rel (%p506) target = $region68
        $region67: #{tpu_custom_call.1} parent=55 // pred_region
          %s509 = sand.u32 %s35, 1
          %s510 = scalar_lea.sflag [#allocation6], %s509
          %s511 = sand.u32 %s97, 1
          %s512 = smul.addr %s511, 8
          %s513 = scalar_lea.vmem [#allocation7], %s512
          %515 = vsyncadd %s510, 0
          %s516 = smul.addr %s35, 8
          %s517 = scalar_lea.hbm %s2, %s516
          %s519 = sshll.u32 %s517, 4
          %s520 = int_to_ptr.hbm [resolvable:$true] %s519
          %s521 = sshll.u32 %s513, 4
          %s522 = int_to_ptr.vmem [resolvable:$true] %s521
          %524 = dma.hbm_to_vmem [thread:$0]  %s520, 128, %s522, %s510
        $region68: #{tpu_custom_call.1} parent=55 // pred_fallthru
          _
      $region56: #{tpu_custom_call.1} parent=5 // pred_fallthru
        _
      %p525 = scmp.le.s32.totalorder 1, %s35
      %p526 = scmp.lt.s32.totalorder %s35, 3
      %p527 = pnand %p525, %p526
      %p528 = pneg %p527
      // Predicated region
      $region69: #{tpu_custom_call.1} parent=5 // pred_check
        _
      $region70: #{tpu_custom_call.1} parent=5 // pred_check_branch
        %530 = sbr.rel (%p527) target = $region72
      $region71: #{tpu_custom_call.1} parent=5 // pred_region
        %s531 = ssub.s32 %s35, 1
        %s532 = sand.u32 %s48, 1
        %s533 = scalar_lea.sflag [#allocation3], %s532
        %s534 = sand.u32 %s48, 1
        %s535 = smul.addr %s534, 8
        %s536 = scalar_lea.vmem [#allocation2], %s535
        // Predicated region
        $region73: #{tpu_custom_call.1} parent=71 // pred_check
          %p537 = pneg %p61
        $region74: #{tpu_custom_call.1} parent=71 // pred_check_branch
          %539 = sbr.rel (%p537) target = $region76
        $region75: #{tpu_custom_call.1} parent=71 // pred_region
          %541 = dma.done %s533, 128
        $region76: #{tpu_custom_call.1} parent=71 // pred_fallthru
          _
        %s542 = sand.u32 %s40, 1
        %s543 = scalar_lea.sflag [#allocation6], %s542
        %s544 = sand.u32 %s74, 1
        %s545 = smul.addr %s544, 8
        %s546 = scalar_lea.vmem [#allocation5], %s545
        // Predicated region
        $region77: #{tpu_custom_call.1} parent=71 // pred_check
          %p547 = pneg %p87
        $region78: #{tpu_custom_call.1} parent=71 // pred_check_branch
          %549 = sbr.rel (%p547) target = $region80
        $region79: #{tpu_custom_call.1} parent=71 // pred_region
          %551 = dma.done %s543, 128
        $region80: #{tpu_custom_call.1} parent=71 // pred_fallthru
          _
        %s552 = sand.u32 %s40, 1
        %s553 = scalar_lea.sflag [#allocation6], %s552
        %s554 = sand.u32 %s100, 1
        %s555 = smul.addr %s554, 8
        %s556 = scalar_lea.vmem [#allocation7], %s555
        // Predicated region
        $region81: #{tpu_custom_call.1} parent=71 // pred_check
          %p557 = pneg %p113
        $region82: #{tpu_custom_call.1} parent=71 // pred_check_branch
          %559 = sbr.rel (%p557) target = $region84
        $region83: #{tpu_custom_call.1} parent=71 // pred_region
          %561 = dma.done %s553, 128
        $region84: #{tpu_custom_call.1} parent=71 // pred_fallthru
          _
        // Predicated region
        $region85: #{tpu_custom_call.1} parent=71 // pred_check
          %p562 = pneg %p134
        $region86: #{tpu_custom_call.1} parent=71 // pred_check_branch
          %564 = sbr.rel (%p562) target = $region88
        $region87: #{tpu_custom_call.1} parent=71 // pred_region
          %566 = dma.done [#allocation9], 512
        $region88: #{tpu_custom_call.1} parent=71 // pred_fallthru
          _
        // Predicated region
        $region89: #{tpu_custom_call.1} parent=71 // pred_check
          %p567 = pneg %p176
        $region90: #{tpu_custom_call.1} parent=71 // pred_check_branch
          %569 = sbr.rel (%p567) target = $region92
        $region91: #{tpu_custom_call.1} parent=71 // pred_region
          %571 = dma.done [#allocation9], 512
        $region92: #{tpu_custom_call.1} parent=71 // pred_fallthru
          _
        // Predicated region
        $region93: #{tpu_custom_call.1} parent=71 // pred_check
          %p572 = pneg %p218
        $region94: #{tpu_custom_call.1} parent=71 // pred_check_branch
          %574 = sbr.rel (%p572) target = $region96
        $region95: #{tpu_custom_call.1} parent=71 // pred_region
          %576 = dma.done [#allocation12], 512
        $region96: #{tpu_custom_call.1} parent=71 // pred_fallthru
          _
        // Predicated region
        $region97: #{tpu_custom_call.1} parent=71 // pred_check
          %p577 = pneg %p260
        $region98: #{tpu_custom_call.1} parent=71 // pred_check_branch
          %579 = sbr.rel (%p577) target = $region100
        $region99: #{tpu_custom_call.1} parent=71 // pred_region
          %581 = dma.done [#allocation12], 512
        $region100: #{tpu_custom_call.1} parent=71 // pred_fallthru
          _
        %s582 = sand.u32 %s48, 1
        %s583 = scalar_lea.sflag [#allocation3], %s582
        %s584 = sand.u32 %s48, 1
        %s585 = smul.addr %s584, 8
        %s586 = scalar_lea.vmem [#allocation2], %s585
        %p587 = pneg %p61
        %p588 = pneg %p58
        %s589 = sand.u32 %s40, 1
        %s590 = scalar_lea.sflag [#allocation6], %s589
        %s591 = sand.u32 %s74, 1
        %s592 = smul.addr %s591, 8
        %s593 = scalar_lea.vmem [#allocation5], %s592
        %p594 = pneg %p87
        %p595 = pneg %p84
        %s596 = sand.u32 %s40, 1
        %s597 = scalar_lea.sflag [#allocation6], %s596
        %s598 = sand.u32 %s100, 1
        %s599 = smul.addr %s598, 8
        %s600 = scalar_lea.vmem [#allocation7], %s599
        %p601 = pneg %p113
        %p602 = pneg %p110
        %p603 = pneg %p134
        %p604 = pneg %p131
        %p605 = pneg %p155
        %p606 = pneg %p152
        %p607 = pneg %p176
        %p608 = pneg %p173
        %p609 = pneg %p197
        %p610 = pneg %p194
        %p611 = pneg %p218
        %p612 = pneg %p215
        %p613 = pneg %p239
        %p614 = pneg %p236
        %p615 = pneg %p260
        %p616 = pneg %p257
        %p617 = pneg %p281
        %p618 = pneg %p278
        %p619 = pneg %p302
        %p620 = pneg %p299
        %p621 = pneg %p323
        %p622 = pneg %p320
        %p623 = pneg %p349
        %p624 = pneg %p346
        %s625 = sand.u32 %s336, 1
        %s626 = scalar_lea.sflag [#allocation4], %s625
        %s627 = sand.u32 %s336, 1
        %s628 = smul.addr %s627, 8
        %s629 = scalar_lea.vmem [#allocation14], %s628
        %p630 = pneg %p375
        %p631 = pneg %p372
        %s632 = sand.u32 %s362, 1
        %s633 = scalar_lea.sflag [#allocation16], %s632
        %s634 = sand.u32 %s362, 1
        %s635 = smul.addr %s634, 32
        %s636 = scalar_lea.vmem [#allocation15], %s635
        %v637 = vld [vmem:[%s536] sm:$0xff]
        %v638 = vld [vmem:[%s546] sm:$0xff]
        %v639 = vld [vmem:[%s556] sm:$0xff]
        %v640 = vld [vmem:[#allocation8] sm:$0xff]
        %v641 = vld [vmem:[#allocation8 + $0x8] sm:$0xff]
        %v642 = vld [vmem:[#allocation8 + $0x10] sm:$0xff]
        %v643 = vld [vmem:[#allocation8 + $0x18] sm:$0xff]
        %v644 = vld [vmem:[%s4] sm:$0x1]
        %v646 = vperm.slane %v644, 0
        %vm648 = vcmask 261120
        %v650 = vsel %vm648, %v637, 0
        %652 = vmatpush.msra.mxu0 0.0
        %653 = vmatpush.msra.mxu0 0.0
        %654 = vmatpush.msra.mxu0 0.0
        %655 = vmatpush.msra.mxu0 0.0
        %656 = vmatpush.msra.mxu0 0.0
        %657 = vmatpush.msra.mxu0 0.0
        %658 = vmatpush.msra.mxu0 0.0
        %659 = vmatpush.msra.mxu0 0.0
        %660 = vmatpush.msra.mxu0 0.0
        %661 = vmatpush.msra.mxu0 0.0
        %662 = vmatpush.msra.mxu0 0.0
        %663 = vmatpush.msra.mxu0 0.0
        %664 = vmatpush.msra.mxu0 %v643
        %665 = vmatpush.msra.mxu0 %v642
        %666 = vmatpush.msra.mxu0 %v641
        %667 = vmatpush.msra.mxu0 %v640
        %668 = vmatmul.f32.gmra.mxu0 %v650
        %v669 = vpop.f32.mrf.mxu0
        %v670 = vadd.f32 %v646, %v669
        %671 = vdwg.mxu0
        %v672 = vld [vmem:[#allocation10] sm:$0xff]
        %v673 = vld [vmem:[#allocation10 + $0x8] sm:$0xff]
        %v674 = vld [vmem:[#allocation10 + $0x10] sm:$0xff]
        %v675 = vld [vmem:[#allocation10 + $0x18] sm:$0xff]
        %v676 = vld [vmem:[%s6] sm:$0x1]
        %v678 = vperm.slane %v676, 0
        %v681 = vsel %vm648, %v638, 0
        %683 = vmatpush.msra.mxu0 0.0
        %684 = vmatpush.msra.mxu0 0.0
        %685 = vmatpush.msra.mxu0 0.0
        %686 = vmatpush.msra.mxu0 0.0
        %687 = vmatpush.msra.mxu0 0.0
        %688 = vmatpush.msra.mxu0 0.0
        %689 = vmatpush.msra.mxu0 0.0
        %690 = vmatpush.msra.mxu0 0.0
        %691 = vmatpush.msra.mxu0 0.0
        %692 = vmatpush.msra.mxu0 0.0
        %693 = vmatpush.msra.mxu0 0.0
        %694 = vmatpush.msra.mxu0 0.0
        %695 = vmatpush.msra.mxu0 %v675
        %696 = vmatpush.msra.mxu0 %v674
        %697 = vmatpush.msra.mxu0 %v673
        %698 = vmatpush.msra.mxu0 %v672
        %699 = vmatmul.f32.gmra.mxu0 %v681
        %v700 = vpop.f32.mrf.mxu0
        %v701 = vadd.f32 %v678, %v700
        %702 = vdwg.mxu0
        %v703 = vld [vmem:[#allocation11] sm:$0xff]
        %v704 = vld [vmem:[#allocation11 + $0x8] sm:$0xff]
        %v705 = vld [vmem:[#allocation11 + $0x10] sm:$0xff]
        %v706 = vld [vmem:[#allocation11 + $0x18] sm:$0xff]
        %v707 = vld [vmem:[%s8] sm:$0x1]
        %v709 = vperm.slane %v707, 0
        %v712 = vsel %vm648, %v639, 0
        %714 = vmatpush.msra.mxu0 0.0
        %715 = vmatpush.msra.mxu0 0.0
        %716 = vmatpush.msra.mxu0 0.0
        %717 = vmatpush.msra.mxu0 0.0
        %718 = vmatpush.msra.mxu0 0.0
        %719 = vmatpush.msra.mxu0 0.0
        %720 = vmatpush.msra.mxu0 0.0
        %721 = vmatpush.msra.mxu0 0.0
        %722 = vmatpush.msra.mxu0 0.0
        %723 = vmatpush.msra.mxu0 0.0
        %724 = vmatpush.msra.mxu0 0.0
        %725 = vmatpush.msra.mxu0 0.0
        %726 = vmatpush.msra.mxu0 %v706
        %727 = vmatpush.msra.mxu0 %v705
        %728 = vmatpush.msra.mxu0 %v704
        %729 = vmatpush.msra.mxu0 %v703
        %730 = vmatmul.f32.gmra.mxu0 %v712
        %v731 = vpop.f32.mrf.mxu0
        %v732 = vadd.f32 %v709, %v731
        %733 = vdwg.mxu0
        %vm734 = vcmask 64512
        %v736 = vsel %vm734, %v670, 0
        %v739 = vsel %vm734, %v701, 0
        %741 = vmatpush.xpose.msra.mxu0 0.0
        %742 = vmatpush.xpose.msra.mxu0 0.0
        %743 = vmatpush.xpose.msra.mxu0 0.0
        %744 = vmatpush.xpose.msra.mxu0 0.0
        %745 = vmatpush.xpose.msra.mxu0 0.0
        %746 = vmatpush.xpose.msra.mxu0 0.0
        %747 = vmatpush.xpose.msra.mxu0 0.0
        %748 = vmatpush.xpose.msra.mxu0 0.0
        %749 = vmatpush.xpose.msra.mxu0 0.0
        %750 = vmatpush.xpose.msra.mxu0 0.0
        %751 = vmatpush.xpose.msra.mxu0 0.0
        %752 = vmatpush.xpose.msra.mxu0 0.0
        %753 = vmatpush.xpose.msra.mxu0 0.0
        %754 = vmatpush.xpose.msra.mxu0 0.0
        %755 = vmatpush.xpose.msra.mxu0 0.0
        %756 = vmatpush.xpose.msra.mxu0 %v739
        %757 = vmatmul.f32.gmra.mxu0 %v736
        %v758 = vpop.f32.mrf.mxu0
        %v759 = vadd.f32 0.0, %v758
        %760 = vdwg.mxu0
        %v761 = vmul.f32 %v759, 0.35355338
        %v762 = vsel %vm734, %v761, -inf
        %763 = vmax.xlane.f32.xlu0 %v762
        %v764 = vpop.xlane.xlu0 %763
        %v765 = vsub.f32 %v761, %v764
        %v766 = vmul.f32 %v765, 1.442695
        %v767 = vpow.pop %v766
        %v768 = vsel %vm734, %v767, 0.0
        %769 = vadd.xlane.f32.xlu0 %v768
        %v770 = vpop.xlane.xlu0 %769
        %v771 = vrcp.pop %v770
        %v772 = vmul.f32 %v770, %v771
        %v773 = vsub.f32 1.0, %v772
        %v774 = vmul.f32 %v771, %v773
        %v775 = vadd.f32 %v771, %v774
        %vm776 = vweird.f32 %v770
        %vm777 = vweird.f32 %v771
        %vm778 = vmor %vm776, %vm777
        %v779 = vsel %vm778, %v771, %v775
        %v780 = vand.u32 2147483647, %v770
        %vm781 = vcmp.eq.f32.partialorder %v780, 8.507059e+37
        %v782 = vand.u32 %v770, 2147483648
        %v783 = vor.u32 1.1754944e-38, %v782
        %v784 = vsel %vm781, %v783, %v779
        %v785 = vmul.f32 %v767, %v784
        %786 = vst.msk [vmem:[%s636] sm:$0xff] %vm734, %v785
        %v788 = vsel %vm734, %v785, 0
        %790 = vmatpush.msra.mxu0 0.0
        %791 = vmatpush.msra.mxu0 0.0
        %792 = vmatpush.msra.mxu0 0.0
        %793 = vmatpush.msra.mxu0 0.0
        %794 = vmatpush.msra.mxu0 0.0
        %795 = vmatpush.msra.mxu0 0.0
        %796 = vmatpush.msra.mxu0 0.0
        %797 = vmatpush.msra.mxu0 0.0
        %798 = vmatpush.msra.mxu0 0.0
        %799 = vmatpush.msra.mxu0 0.0
        %800 = vmatpush.msra.mxu0 0.0
        %801 = vmatpush.msra.mxu0 0.0
        %802 = vmatpush.msra.mxu0 0.0
        %803 = vmatpush.msra.mxu0 0.0
        %804 = vmatpush.msra.mxu0 0.0
        %805 = vmatpush.msra.mxu0 %v732
        %806 = vmatmul.f32.gmra.mxu0 %v788
        %v807 = vpop.f32.mrf.mxu0
        %v808 = vadd.f32 0.0, %v807
        %809 = vdwg.mxu0
        %810 = vrot.lane.b32.xlu0 %v670, 120
        %v811 = vpop.permute.xlu0 %810
        %812 = vrot.lane.b32.xlu0 %v701, 120
        %v813 = vpop.permute.xlu0 %812
        %v814 = vsel %vm734, %v811, 0
        %v816 = vsel %vm734, %v813, 0
        %818 = vmatpush.xpose.msra.mxu0 0.0
        %819 = vmatpush.xpose.msra.mxu0 0.0
        %820 = vmatpush.xpose.msra.mxu0 0.0
        %821 = vmatpush.xpose.msra.mxu0 0.0
        %822 = vmatpush.xpose.msra.mxu0 0.0
        %823 = vmatpush.xpose.msra.mxu0 0.0
        %824 = vmatpush.xpose.msra.mxu0 0.0
        %825 = vmatpush.xpose.msra.mxu0 0.0
        %826 = vmatpush.xpose.msra.mxu0 0.0
        %827 = vmatpush.xpose.msra.mxu0 0.0
        %828 = vmatpush.xpose.msra.mxu0 0.0
        %829 = vmatpush.xpose.msra.mxu0 0.0
        %830 = vmatpush.xpose.msra.mxu0 0.0
        %831 = vmatpush.xpose.msra.mxu0 0.0
        %832 = vmatpush.xpose.msra.mxu0 0.0
        %833 = vmatpush.xpose.msra.mxu0 %v816
        %834 = vmatmul.f32.gmra.mxu0 %v814
        %v835 = vpop.f32.mrf.mxu0
        %v836 = vadd.f32 0.0, %v835
        %837 = vdwg.mxu0
        %v838 = vmul.f32 %v836, 0.35355338
        %v839 = vsel %vm734, %v838, -inf
        %840 = vmax.xlane.f32.xlu0 %v839
        %v841 = vpop.xlane.xlu0 %840
        %v842 = vsub.f32 %v838, %v841
        %v843 = vmul.f32 %v842, 1.442695
        %v844 = vpow.pop %v843
        %v845 = vsel %vm734, %v844, 0.0
        %846 = vadd.xlane.f32.xlu0 %v845
        %v847 = vpop.xlane.xlu0 %846
        %v848 = vrcp.pop %v847
        %v849 = vmul.f32 %v847, %v848
        %v850 = vsub.f32 1.0, %v849
        %v851 = vmul.f32 %v848, %v850
        %v852 = vadd.f32 %v848, %v851
        %vm853 = vweird.f32 %v847
        %vm854 = vweird.f32 %v848
        %vm855 = vmor %vm853, %vm854
        %v856 = vsel %vm855, %v848, %v852
        %v857 = vand.u32 2147483647, %v847
        %vm858 = vcmp.eq.f32.partialorder %v857, 8.507059e+37
        %v859 = vand.u32 %v847, 2147483648
        %v860 = vor.u32 1.1754944e-38, %v859
        %v861 = vsel %vm858, %v860, %v856
        %v862 = vmul.f32 %v844, %v861
        %s863 = scalar_lea.vmem %s636, 8 [#allocation15]
        %864 = vst.msk [vmem:[%s863] sm:$0xff] %vm734, %v862
        %866 = vrot.lane.b32.xlu0 %v732, 120
        %v867 = vpop.permute.xlu0 %866
        %v870 = vsel %vm734, %v862, 0
        %872 = vmatpush.msra.mxu0 0.0
        %873 = vmatpush.msra.mxu0 0.0
        %874 = vmatpush.msra.mxu0 0.0
        %875 = vmatpush.msra.mxu0 0.0
        %876 = vmatpush.msra.mxu0 0.0
        %877 = vmatpush.msra.mxu0 0.0
        %878 = vmatpush.msra.mxu0 0.0
        %879 = vmatpush.msra.mxu0 0.0
        %880 = vmatpush.msra.mxu0 0.0
        %881 = vmatpush.msra.mxu0 0.0
        %882 = vmatpush.msra.mxu0 0.0
        %883 = vmatpush.msra.mxu0 0.0
        %884 = vmatpush.msra.mxu0 0.0
        %885 = vmatpush.msra.mxu0 0.0
        %886 = vmatpush.msra.mxu0 0.0
        %887 = vmatpush.msra.mxu0 %v867
        %888 = vmatmul.f32.gmra.mxu0 %v870
        %v889 = vpop.f32.mrf.mxu0
        %v890 = vadd.f32 0.0, %v889
        %891 = vdwg.mxu0
        %892 = vrot.lane.b32.xlu0 %v670, 112
        %v893 = vpop.permute.xlu0 %892
        %894 = vrot.lane.b32.xlu0 %v701, 112
        %v895 = vpop.permute.xlu0 %894
        %v896 = vsel %vm734, %v893, 0
        %v898 = vsel %vm734, %v895, 0
        %900 = vmatpush.xpose.msra.mxu0 0.0
        %901 = vmatpush.xpose.msra.mxu0 0.0
        %902 = vmatpush.xpose.msra.mxu0 0.0
        %903 = vmatpush.xpose.msra.mxu0 0.0
        %904 = vmatpush.xpose.msra.mxu0 0.0
        %905 = vmatpush.xpose.msra.mxu0 0.0
        %906 = vmatpush.xpose.msra.mxu0 0.0
        %907 = vmatpush.xpose.msra.mxu0 0.0
        %908 = vmatpush.xpose.msra.mxu0 0.0
        %909 = vmatpush.xpose.msra.mxu0 0.0
        %910 = vmatpush.xpose.msra.mxu0 0.0
        %911 = vmatpush.xpose.msra.mxu0 0.0
        %912 = vmatpush.xpose.msra.mxu0 0.0
        %913 = vmatpush.xpose.msra.mxu0 0.0
        %914 = vmatpush.xpose.msra.mxu0 0.0
        %915 = vmatpush.xpose.msra.mxu0 %v898
        %916 = vmatmul.f32.gmra.mxu0 %v896
        %v917 = vpop.f32.mrf.mxu0
        %v918 = vadd.f32 0.0, %v917
        %919 = vdwg.mxu0
        %v920 = vmul.f32 %v918, 0.35355338
        %v921 = vsel %vm734, %v920, -inf
        %922 = vmax.xlane.f32.xlu0 %v921
        %v923 = vpop.xlane.xlu0 %922
        %v924 = vsub.f32 %v920, %v923
        %v925 = vmul.f32 %v924, 1.442695
        %v926 = vpow.pop %v925
        %v927 = vsel %vm734, %v926, 0.0
        %928 = vadd.xlane.f32.xlu0 %v927
        %v929 = vpop.xlane.xlu0 %928
        %v930 = vrcp.pop %v929
        %v931 = vmul.f32 %v929, %v930
        %v932 = vsub.f32 1.0, %v931
        %v933 = vmul.f32 %v930, %v932
        %v934 = vadd.f32 %v930, %v933
        %vm935 = vweird.f32 %v929
        %vm936 = vweird.f32 %v930
        %vm937 = vmor %vm935, %vm936
        %v938 = vsel %vm937, %v930, %v934
        %v939 = vand.u32 2147483647, %v929
        %vm940 = vcmp.eq.f32.partialorder %v939, 8.507059e+37
        %v941 = vand.u32 %v929, 2147483648
        %v942 = vor.u32 1.1754944e-38, %v941
        %v943 = vsel %vm940, %v942, %v938
        %v944 = vmul.f32 %v926, %v943
        %s945 = scalar_lea.vmem %s636, 16 [#allocation15]
        %946 = vst.msk [vmem:[%s945] sm:$0xff] %vm734, %v944
        %947 = vrot.lane.b32.xlu0 %v732, 112
        %v948 = vpop.permute.xlu0 %947
        %v951 = vsel %vm734, %v944, 0
        %953 = vmatpush.msra.mxu0 0.0
        %954 = vmatpush.msra.mxu0 0.0
        %955 = vmatpush.msra.mxu0 0.0
        %956 = vmatpush.msra.mxu0 0.0
        %957 = vmatpush.msra.mxu0 0.0
        %958 = vmatpush.msra.mxu0 0.0
        %959 = vmatpush.msra.mxu0 0.0
        %960 = vmatpush.msra.mxu0 0.0
        %961 = vmatpush.msra.mxu0 0.0
        %962 = vmatpush.msra.mxu0 0.0
        %963 = vmatpush.msra.mxu0 0.0
        %964 = vmatpush.msra.mxu0 0.0
        %965 = vmatpush.msra.mxu0 0.0
        %966 = vmatpush.msra.mxu0 0.0
        %967 = vmatpush.msra.mxu0 0.0
        %968 = vmatpush.msra.mxu0 %v948
        %969 = vmatmul.f32.gmra.mxu0 %v951
        %v970 = vpop.f32.mrf.mxu0
        %v971 = vadd.f32 0.0, %v970
        %972 = vdwg.mxu0
        %973 = vrot.lane.b32.xlu0 %v670, 104
        %v974 = vpop.permute.xlu0 %973
        %975 = vrot.lane.b32.xlu0 %v701, 104
        %v976 = vpop.permute.xlu0 %975
        %v977 = vsel %vm734, %v974, 0
        %v979 = vsel %vm734, %v976, 0
        %981 = vmatpush.xpose.msra.mxu0 0.0
        %982 = vmatpush.xpose.msra.mxu0 0.0
        %983 = vmatpush.xpose.msra.mxu0 0.0
        %984 = vmatpush.xpose.msra.mxu0 0.0
        %985 = vmatpush.xpose.msra.mxu0 0.0
        %986 = vmatpush.xpose.msra.mxu0 0.0
        %987 = vmatpush.xpose.msra.mxu0 0.0
        %988 = vmatpush.xpose.msra.mxu0 0.0
        %989 = vmatpush.xpose.msra.mxu0 0.0
        %990 = vmatpush.xpose.msra.mxu0 0.0
        %991 = vmatpush.xpose.msra.mxu0 0.0
        %992 = vmatpush.xpose.msra.mxu0 0.0
        %993 = vmatpush.xpose.msra.mxu0 0.0
        %994 = vmatpush.xpose.msra.mxu0 0.0
        %995 = vmatpush.xpose.msra.mxu0 0.0
        %996 = vmatpush.xpose.msra.mxu0 %v979
        %997 = vmatmul.f32.gmra.mxu0 %v977
        %v998 = vpop.f32.mrf.mxu0
        %v999 = vadd.f32 0.0, %v998
        %1000 = vdwg.mxu0
        %v1001 = vmul.f32 %v999, 0.35355338
        %v1002 = vsel %vm734, %v1001, -inf
        %1003 = vmax.xlane.f32.xlu0 %v1002
        %v1004 = vpop.xlane.xlu0 %1003
        %v1005 = vsub.f32 %v1001, %v1004
        %v1006 = vmul.f32 %v1005, 1.442695
        %v1007 = vpow.pop %v1006
        %v1008 = vsel %vm734, %v1007, 0.0
        %1009 = vadd.xlane.f32.xlu0 %v1008
        %v1010 = vpop.xlane.xlu0 %1009
        %v1011 = vrcp.pop %v1010
        %v1012 = vmul.f32 %v1010, %v1011
        %v1013 = vsub.f32 1.0, %v1012
        %v1014 = vmul.f32 %v1011, %v1013
        %v1015 = vadd.f32 %v1011, %v1014
        %vm1016 = vweird.f32 %v1010
        %vm1017 = vweird.f32 %v1011
        %vm1018 = vmor %vm1016, %vm1017
        %v1019 = vsel %vm1018, %v1011, %v1015
        %v1020 = vand.u32 2147483647, %v1010
        %vm1021 = vcmp.eq.f32.partialorder %v1020, 8.507059e+37
        %v1022 = vand.u32 %v1010, 2147483648
        %v1023 = vor.u32 1.1754944e-38, %v1022
        %v1024 = vsel %vm1021, %v1023, %v1019
        %v1025 = vmul.f32 %v1007, %v1024
        %s1026 = scalar_lea.vmem %s636, 24 [#allocation15]
        %1027 = vst.msk [vmem:[%s1026] sm:$0xff] %vm734, %v1025
        %1028 = vrot.lane.b32.xlu0 %v732, 104
        %v1029 = vpop.permute.xlu0 %1028
        %v1032 = vsel %vm734, %v1025, 0
        %1034 = vmatpush.msra.mxu0 0.0
        %1035 = vmatpush.msra.mxu0 0.0
        %1036 = vmatpush.msra.mxu0 0.0
        %1037 = vmatpush.msra.mxu0 0.0
        %1038 = vmatpush.msra.mxu0 0.0
        %1039 = vmatpush.msra.mxu0 0.0
        %1040 = vmatpush.msra.mxu0 0.0
        %1041 = vmatpush.msra.mxu0 0.0
        %1042 = vmatpush.msra.mxu0 0.0
        %1043 = vmatpush.msra.mxu0 0.0
        %1044 = vmatpush.msra.mxu0 0.0
        %1045 = vmatpush.msra.mxu0 0.0
        %1046 = vmatpush.msra.mxu0 0.0
        %1047 = vmatpush.msra.mxu0 0.0
        %1048 = vmatpush.msra.mxu0 0.0
        %1049 = vmatpush.msra.mxu0 %v1029
        %1050 = vmatmul.f32.gmra.mxu0 %v1032
        %v1051 = vpop.f32.mrf.mxu0
        %v1052 = vadd.f32 0.0, %v1051
        %1053 = vdwg.mxu0
        %1055 = vrot.lane.b32.xlu0 %v890, 8
        %v1056 = vpop.permute.xlu0 %1055
        %1059 = vrot.lane.b32.xlu0 %v971, 16
        %v1060 = vpop.permute.xlu0 %1059
        %1063 = vrot.lane.b32.xlu0 %v1052, 24
        %v1064 = vpop.permute.xlu0 %1063
        %v1066 = vsel %vm734, %v808, %v1056
        %vm1067 = vcmask 130048
        %v1068 = vsel %vm1067, %v1066, %v1060
        %vm1069 = vcmask 195584
        %v1070 = vsel %vm1069, %v1068, %v1064
        %v1071 = vld [vmem:[#allocation13] sm:$0xff]
        %v1072 = vld [vmem:[#allocation13 + $0x8] sm:$0xff]
        %v1073 = vld [vmem:[#allocation13 + $0x10] sm:$0xff]
        %v1074 = vld [vmem:[#allocation13 + $0x18] sm:$0xff]
        %v1075 = vld [vmem:[%s10] sm:$0x1]
        %v1077 = vperm.slane %v1075, 0
        %v1080 = vsel %vm648, %v1070, 0
        %1082 = vmatpush.msra.mxu0 0.0
        %1083 = vmatpush.msra.mxu0 0.0
        %1084 = vmatpush.msra.mxu0 0.0
        %1085 = vmatpush.msra.mxu0 0.0
        %1086 = vmatpush.msra.mxu0 0.0
        %1087 = vmatpush.msra.mxu0 0.0
        %1088 = vmatpush.msra.mxu0 0.0
        %1089 = vmatpush.msra.mxu0 0.0
        %1090 = vmatpush.msra.mxu0 0.0
        %1091 = vmatpush.msra.mxu0 0.0
        %1092 = vmatpush.msra.mxu0 0.0
        %1093 = vmatpush.msra.mxu0 0.0
        %1094 = vmatpush.msra.mxu0 %v1074
        %1095 = vmatpush.msra.mxu0 %v1073
        %1096 = vmatpush.msra.mxu0 %v1072
        %1097 = vmatpush.msra.mxu0 %v1071
        %1098 = vmatmul.f32.gmra.mxu0 %v1080
        %v1099 = vpop.f32.mrf.mxu0
        %v1100 = vadd.f32 %v1077, %v1099
        %1101 = vdwg.mxu0
        %v1102 = vadd.f32 %v1100, %v637
        %v1103 = vsel %vm648, %v1102, 0.0
        %1104 = vadd.xlane.f32.xlu0 %v1103
        %v1105 = vpop.xlane.xlu0 %1104
        %v1106 = vrcp.pop 32.0
        %v1107 = vmul.f32 32.0, %v1106
        %v1108 = vsub.f32 1.0, %v1107
        %v1109 = vmul.f32 %v1106, %v1108
        %v1110 = vadd.f32 %v1106, %v1109
        %vm1111 = vweird.f32 %v1106
        %v1112 = vsel %vm1111, %v1106, %v1110
        %v1113 = vmul.f32 %v1105, %v1112
        %v1114 = vsub.f32 %v1102, %v1113
        %v1115 = vmul.f32 %v1114, %v1114
        %v1116 = vsel %vm648, %v1115, 0.0
        %1117 = vadd.xlane.f32.xlu0 %v1116
        %v1118 = vpop.xlane.xlu0 %1117
        %v1119 = vmul.f32 %v1118, %v1112
        %v1120 = vadd.f32 %v1119, 1e-05
        %v1121 = vrsqrt.pop %v1120
        %v1122 = vmul.f32 %v1121, %v1120
        %v1123 = vmul.f32 %v1122, %v1121
        %v1124 = vmul.f32 0.5, %v1123
        %v1125 = vsub.f32 1.5, %v1124
        %v1126 = vmul.f32 %v1121, %v1125
        %vm1127 = vweird.f32 %v1120
        %vm1128 = vweird.f32 %v1121
        %vm1129 = vmor %vm1127, %vm1128
        %v1130 = vsel %vm1129, %v1121, %v1126
        %v1131 = vmul.f32 %v1114, %v1130
        %v1132 = vld [vmem:[%s11] sm:$0x1]
        %v1134 = vperm.slane %v1132, 0
        %v1136 = vmul.f32 %v1131, %v1134
        %v1137 = vld [vmem:[%s12] sm:$0x1]
        %v1139 = vperm.slane %v1137, 0
        %v1141 = vadd.f32 %v1136, %v1139
        %1142 = vst.msk [vmem:[%s629] sm:$0xff] %vm648, %v1141
        %s1143 = sand.u32 %s336, 1
        %s1144 = scalar_lea.sflag [#allocation4], %s1143
        %s1145 = sand.u32 %s336, 1
        %s1146 = smul.addr %s1145, 8
        %s1147 = scalar_lea.vmem [#allocation14], %s1146
        %s1148 = sand.u32 %s362, 1
        %s1149 = scalar_lea.sflag [#allocation16], %s1148
        %s1150 = sand.u32 %s362, 1
        %s1151 = smul.addr %s1150, 32
        %s1152 = scalar_lea.vmem [#allocation15], %s1151
        // Predicated region
        $region101: #{tpu_custom_call.1} parent=71 // pred_check
          %p1153 = pneg %p346
        $region102: #{tpu_custom_call.1} parent=71 // pred_check_branch
          %1155 = sbr.rel (%p1153) target = $region104
        $region103: #{tpu_custom_call.1} parent=71 // pred_region
          %1157 = vsyncadd %s1144, 0
          %s1158 = smul.addr %s40, 8
          %s1159 = scalar_lea.hbm %s13, %s1158
          %s1161 = sshll.u32 %s1147, 4
          %s1162 = int_to_ptr.vmem [resolvable:$true] %s1161
          %s1163 = sshll.u32 %s1159, 4
          %s1164 = int_to_ptr.hbm [resolvable:$true] %s1163
          %1166 = dma.vmem_to_hbm [thread:$0]  %s1162, 128, %s1164, %s1144
        $region104: #{tpu_custom_call.1} parent=71 // pred_fallthru
          _
        // Predicated region
        $region105: #{tpu_custom_call.1} parent=71 // pred_check
          %p1167 = pneg %p372
        $region106: #{tpu_custom_call.1} parent=71 // pred_check_branch
          %1169 = sbr.rel (%p1167) target = $region108
        $region107: #{tpu_custom_call.1} parent=71 // pred_region
          %1171 = vsyncadd %s1149, 0
          %s1172 = smul.addr %s40, 8
          %s1173 = scalar_lea.hbm %s14, %s1172
          %s1174 = sshll.u32 %s1152, 4
          %s1175 = int_to_ptr.vmem [resolvable:$true] %s1174
          %s1176 = sshll.u32 %s1173, 4
          %s1177 = int_to_ptr.hbm [resolvable:$true] %s1176
          %1182 = dma.vmem_to_hbm [thread:$0]  %s1175, 512, %s1177, %s1149, 128, 256, 8
        $region108: #{tpu_custom_call.1} parent=71 // pred_fallthru
          _
      $region72: #{tpu_custom_call.1} parent=5 // pred_fallthru
        _
      %p1183 = scmp.le.s32.totalorder 2, %s35
      // Predicated region
      $region109: #{tpu_custom_call.1} parent=5 // pred_check
        %p1184 = pneg %p1183
      $region110: #{tpu_custom_call.1} parent=5 // pred_check_branch
        %1186 = sbr.rel (%p1184) target = $region112
      $region111: #{tpu_custom_call.1} parent=5 // pred_region
        %s1187 = ssub.s32 %s35, 2
        // Predicated region
        $region113: #{tpu_custom_call.1} parent=111 // pred_check
          %p1188 = pneg %p352
        $region114: #{tpu_custom_call.1} parent=111 // pred_check_branch
          %1190 = sbr.rel (%p1188) target = $region116
        $region115: #{tpu_custom_call.1} parent=111 // pred_region
          %s1191 = sand.u32 %s337, 1
          %s1192 = scalar_lea.sflag [#allocation4], %s1191
          %s1193 = sand.u32 %s337, 1
          %s1194 = smul.addr %s1193, 8
          %s1195 = scalar_lea.vmem [#allocation14], %s1194
          %1197 = dma.done %s1192, 128
        $region116: #{tpu_custom_call.1} parent=111 // pred_fallthru
          _
        // Predicated region
        $region117: #{tpu_custom_call.1} parent=111 // pred_check
          %p1198 = pneg %p378
        $region118: #{tpu_custom_call.1} parent=111 // pred_check_branch
          %1200 = sbr.rel (%p1198) target = $region120
        $region119: #{tpu_custom_call.1} parent=111 // pred_region
          %s1201 = sand.u32 %s363, 1
          %s1202 = scalar_lea.sflag [#allocation16], %s1201
          %s1203 = sand.u32 %s363, 1
          %s1204 = smul.addr %s1203, 32
          %s1205 = scalar_lea.vmem [#allocation15], %s1204
          %1207 = dma.done %s1202, 512
        $region120: #{tpu_custom_call.1} parent=111 // pred_fallthru
          _
      $region112: #{tpu_custom_call.1} parent=5 // pred_fallthru
        _
    $region6: #{tpu_custom_call.1} parent=1 // loop_footer
      %s39 = sadd.s32 1, %s35
    $region7: #{tpu_custom_call.1} parent=1 // loop_footer_branch
      %34 = sbr.rel target = $region3
    $region8: #{tpu_custom_call.1} parent=1 // loop_exit
      _
    %1208 = vsyncpa [#allocation3], 1
    %s1209 = scalar_lea.sflag [#allocation3], 1
    %1210 = vsyncpa %s1209, 1
    %1211 = vsyncpa [#allocation6], 1
    %s1212 = scalar_lea.sflag [#allocation6], 1
    %1213 = vsyncpa %s1212, 1
    %1214 = vsyncpa [#allocation9], 1
    %1215 = vsyncpa [#allocation12], 1
    %1216 = vsyncpa [#allocation4], 1
    %s1217 = scalar_lea.sflag [#allocation4], 1
    %1218 = vsyncpa %s1217, 1
    %1219 = vsyncpa [#allocation16], 1
    %s1220 = scalar_lea.sflag [#allocation16], 1
    %1221 = vsyncpa %s1220, 1

</llo_original>
